<compile_context>
chip_gen: v5e
topology: v5e:2x2
jax: 0.10.0
libtpu: 0.0.40
codegen_flags: <defaults>
</compile_context>

<pallas_src>
import jax
import jax.numpy as jnp
from jax.experimental import pallas as pl
from jax.experimental.pallas import tpu as pltpu

# ----------------------------- model sizes ----------------------------------
D_IN = 64          # flattened profile length
HIDDEN = 100       # encoder / decoder hidden width
EMB = 50           # embedding dim feeding enc_mu / enc_log_var (fixed by module)
LATENT = 8         # latent_dim default

_T = 128           # lane tile
_KP = 128          # padded contraction dim (all layer fan-ins <= 128)
_BM = 256          # rows (batch) per grid step
_W_LANES = 7 * _T  # [enc1|enc2|mu|log_var|fc_dec|dec1|dec2] -> 896 lanes
_OUT_LANES = 5 * _T  # [outs|emb|mu|log_var|z] -> 640 lanes

# per-row MXU flops: 5 matmuls of (K=128,N=128) + 1 matmul of (K=128,N=256)
_FLOPS_PER_ROW = 2 * (5 * _KP * _T + _KP * 2 * _T)


# ----------------------------- fused Pallas kernel ---------------------------
def _vae_kernel(x_ref, eps_ref, w_ref, b_ref, out_ref):
    """One batch tile of the full VAE forward; weights/biases VMEM-resident."""
    f32, bf16 = jnp.float32, jnp.bfloat16
    T = _T

    def layer(act_bf16, tile, n_tiles=1):
        lo, hi = tile * T, (tile + n_tiles) * T
        acc = jnp.dot(act_bf16, w_ref[:, lo:hi], preferred_element_type=f32)
        return acc + b_ref[:, lo:hi]            # (1, n) bias broadcasts over rows

    x = x_ref[...].astype(bf16)
    h = jnp.maximum(layer(x, 0), 0.0)               # enc1 + ReLU
    emb = layer(h.astype(bf16), 1)                  # enc2  -> embeddings
    mulv = layer(emb.astype(bf16), 2, n_tiles=2)    # [enc_mu | enc_log_var], one matmul
    mu, lv = mulv[:, :T], mulv[:, T:]               # lane-tile-aligned slices
    z = mu + jnp.exp(0.5 * lv) * eps_ref[...]       # reparametrize (padded lanes stay 0)
    up = layer(z.astype(bf16), 4)                   # fc_dec
    d = jnp.maximum(layer(up.astype(bf16), 5), 0.0)  # dec1 + ReLU
    outs = layer(d.astype(bf16), 6)                 # dec2

    # single lane-dense output slab: [outs | emb | mu | log_var | z]
    out_ref[:, 0 * T:1 * T] = outs
    out_ref[:, 1 * T:2 * T] = emb
    out_ref[:, 2 * T:3 * T] = mu
    out_ref[:, 3 * T:4 * T] = lv
    out_ref[:, 4 * T:5 * T] = z


# ----------------------------- parameters ------------------------------------
def _torch_linear_init(key, fan_in, fan_out):
    """PyTorch nn.Linear default init U(-1/sqrt(fan_in), 1/sqrt(fan_in)),
    weight in (in, out) layout."""
    kw, kb = jax.random.split(key)
    bound = 1.0 / float(fan_in) ** 0.5
    w = jax.random.uniform(kw, (fan_in, fan_out), jnp.float32, -bound, bound)
    b = jax.random.uniform(kb, (fan_out,), jnp.float32, -bound, bound)
    return w, b


def _pad_w(w):
    r, c = w.shape
    return jnp.pad(w, ((0, _KP - r), (0, _T - c)))


def _pad_b(b):
    return jnp.pad(b.reshape(1, -1), ((0, 0), (0, _T - b.shape[0])))


def init_params(key):
    # layer order matches the lane layout used inside the kernel
    shapes = [
        (D_IN, HIDDEN),    # enc1
        (HIDDEN, EMB),     # enc2
        (EMB, LATENT),     # enc_mu
        (EMB, LATENT),     # enc_log_var
        (LATENT, EMB),     # fc_dec
        (EMB, HIDDEN),     # dec1
        (HIDDEN, D_IN),    # dec2
    ]
    keys = jax.random.split(key, len(shapes))
    ws, bs = [], []
    for k, (fi, fo) in zip(keys, shapes):
        w, b = _torch_linear_init(k, fi, fo)
        ws.append(_pad_w(w))
        bs.append(_pad_b(b))
    return {
        "w": jnp.concatenate(ws, axis=1).astype(jnp.bfloat16),  # (128, 896) bf16 slab
        "b": jnp.concatenate(bs, axis=1),                       # (1, 896)   f32 slab
    }


# ----------------------------- forward ---------------------------------------
@jax.jit
def mlp_vae_forward(params, x, eps):
    """Mirrors MLPVariationalAutoencoder.forward.

    Returns (outs, mu, log_var, embeddings, z)."""
    B = x.shape[0]
    nsteps = -(-B // _BM)
    rows = nsteps * _BM

    xp = jnp.pad(x.astype(jnp.float32), ((0, rows - B), (0, _T - D_IN)))
    epsp = jnp.pad(eps.astype(jnp.float32), ((0, rows - B), (0, _T - LATENT)))

    cost = pl.CostEstimate(
        flops=rows * _FLOPS_PER_ROW,
        transcendentals=rows * _T,
        bytes_accessed=(xp.size + epsp.size) * 4
        + params["w"].size * 2
        + params["b"].size * 4
        + rows * _OUT_LANES * 4,
    )

    slab = pl.pallas_call(
        _vae_kernel,
        out_shape=jax.ShapeDtypeStruct((rows, _OUT_LANES), jnp.float32),
        grid=(nsteps,),
        in_specs=[
            pl.BlockSpec((_BM, _T), lambda i: (i, 0)),           # x tile
            pl.BlockSpec((_BM, _T), lambda i: (i, 0)),           # eps tile
            pl.BlockSpec((_KP, _W_LANES), lambda i: (0, 0)),     # weight slab (resident)
            pl.BlockSpec((1, _W_LANES), lambda i: (0, 0)),       # bias slab   (resident)
        ],
        out_specs=pl.BlockSpec((_BM, _OUT_LANES), lambda i: (i, 0)),
        compiler_params=pltpu.CompilerParams(
            dimension_semantics=("parallel",)),
        cost_estimate=cost,
    )(xp, epsp, params["w"], params["b"])

    outs = slab[:B, 0 * _T: 0 * _T + D_IN]
    embeddings = slab[:B, 1 * _T: 1 * _T + EMB]
    mu = slab[:B, 2 * _T: 2 * _T + LATENT]
    log_var = slab[:B, 3 * _T: 3 * _T + LATENT]
    z = slab[:B, 4 * _T: 4 * _T + LATENT]
    return outs, mu, log_var, embeddings, z


# ----------------------------- pure-JAX references ----------------------------
def _reference_forward(params, x, eps, *, match_bf16):
    """Pure-JAX reference on the same packed parameters.

    match_bf16=True mirrors the kernel's bf16-MXU-input / f32-accumulation
    numerics exactly; False is a full-f32 HIGHEST-precision sanity reference
    (looser tolerance absorbs the bf16 quantization)."""
    T = _T
    w, b = params["w"], params["b"]
    B = x.shape[0]
    xp = jnp.pad(x.astype(jnp.float32), ((0, 0), (0, T - D_IN)))
    ep = jnp.pad(eps.astype(jnp.float32), ((0, 0), (0, T - LATENT)))

    if match_bf16:
        wf = w
        def dot(a, wt):
            return jnp.dot(a.astype(jnp.bfloat16), wt,
                           preferred_element_type=jnp.float32)
    else:
        wf = w.astype(jnp.float32)
        hi = jax.lax.Precision.HIGHEST
        def dot(a, wt):
            return jnp.dot(a, wt, precision=hi)

    def layer(a, tile, n=1):
        lo, hi_ = tile * T, (tile + n) * T
        return dot(a, wf[:, lo:hi_]) + b[:, lo:hi_]

    h = jnp.maximum(layer(xp, 0), 0.0)
    emb = layer(h, 1)
    mulv = layer(emb, 2, 2)
    mu, lv = mulv[:, :T], mulv[:, T:]
    z = mu + jnp.exp(0.5 * lv) * ep
    up = layer(z, 4)
    d = jnp.maximum(layer(up, 5), 0.0)
    outs = layer(d, 6)
    return (outs[:, :D_IN], mu[:, :LATENT], lv[:, :LATENT],
            emb[:, :EMB], z[:, :LATENT])


# ----------------------------- main -------------------------------------------
if __name__ == "__main__":
    root = jax.random.PRNGKey(0)
    k_param, k_x, k_eps = jax.random.split(root, 3)
    params = init_params(k_param)

    # batch=2: the spec-scale tiny case; batch=300: ragged multi-tile grid case
    for batch in (2, 300):
        kx = jax.random.fold_in(k_x, batch)
        ke = jax.random.fold_in(k_eps, batch)
        x = jax.random.normal(kx, (batch, D_IN), dtype=jnp.float32)
        # eps ~ N(0,1): stand-in for torch.randn((B, latent)) in reparametrize
        eps = jax.random.normal(ke, (batch, LATENT), dtype=jnp.float32)

        outs, mu, log_var, embeddings, z = mlp_vae_forward(params, x, eps)
        jax.block_until_ready((outs, mu, log_var, embeddings, z))

        assert outs.shape == (batch, D_IN)
        assert mu.shape == (batch, LATENT)
        assert log_var.shape == (batch, LATENT)
        assert embeddings.shape == (batch, EMB)
        assert z.shape == (batch, LATENT)

        got = (outs, mu, log_var, embeddings, z)

        # exact-numerics check (same bf16-in / f32-accum math as the kernel)
        ref_bf16 = _reference_forward(params, x, eps, match_bf16=True)
        for a, r in zip(got, ref_bf16):
            assert jnp.allclose(a, r, rtol=2e-3, atol=2e-3), \
                "mismatch vs bf16-matched reference"

        # semantic sanity check vs full-f32 HIGHEST-precision math
        ref_f32 = _reference_forward(params, x, eps, match_bf16=False)
        for a, r in zip(got, ref_f32):
            assert jnp.allclose(a, r, rtol=2e-2, atol=2e-2), \
                "mismatch vs f32 reference"

    print("KERNEL_OK")
</pallas_src>

<mosaic_0001>
module attributes {stable_mosaic.version = 11 : i64} {
  func.func @_vae_kernel(%arg0: i32, %arg1: memref<256x128xf32, #tpu.memory_space<vmem>>, %arg2: memref<256x128xf32, #tpu.memory_space<vmem>>, %arg3: memref<128x896xbf16, #tpu.memory_space<vmem>>, %arg4: memref<1x896xf32, #tpu.memory_space<vmem>>, %arg5: memref<256x640xf32, #tpu.memory_space<vmem>>) attributes {dimension_semantics = [#tpu.dimension_semantics<parallel>], iteration_bounds = array<i64: 1>, scalar_prefetch = 0 : i64, scratch_operands = 0 : i64, tpu.core_type = #tpu.core_type<tc>, window_params = [{transform_indices = @transform_0, window_bounds = array<i64: 256, 128>}, {transform_indices = @transform_1, window_bounds = array<i64: 256, 128>}, {pipeline_mode = #tpu.pipeline_mode<synchronous>, transform_indices = @transform_2, window_bounds = array<i64: 128, 896>}, {pipeline_mode = #tpu.pipeline_mode<synchronous>, transform_indices = @transform_3, window_bounds = array<i64: 1, 896>}, {transform_indices = @transform_4, window_bounds = array<i64: 256, 640>}]} {
    %c0 = arith.constant 0 : index
    %c0_0 = arith.constant 0 : index
    %0 = vector.load %arg1[%c0, %c0_0] : memref<256x128xf32, #tpu.memory_space<vmem>>, vector<256x128xf32>
    %1 = arith.truncf %0 : vector<256x128xf32> to vector<256x128xbf16>
    %c0_1 = arith.constant 0 : index
    %c0_2 = arith.constant 0 : index
    %2 = vector.load %arg3[%c0_1, %c0_2] : memref<128x896xbf16, #tpu.memory_space<vmem>>, vector<128x128xbf16>
    %cst = arith.constant dense<0.000000e+00> : vector<256x128xf32>
    %3 = tpu.matmul %1, %2, %cst {dimension_numbers = #tpu.dot_dimension_numbers<[1], [0], [0], [1], [0, 0, 1, 1], [], []>} : vector<256x128xbf16>, vector<128x128xbf16>, vector<256x128xf32> -> vector<256x128xf32>
    %c0_3 = arith.constant 0 : index
    %c0_4 = arith.constant 0 : index
    %4 = vector.load %arg4[%c0_3, %c0_4] : memref<1x896xf32, #tpu.memory_space<vmem>>, vector<1x128xf32>
    %5 = vector.broadcast %4 : vector<1x128xf32> to vector<256x128xf32>
    %6 = arith.addf %3, %5 : vector<256x128xf32>
    %cst_5 = arith.constant 0.000000e+00 : f32
    %7 = vector.broadcast %cst_5 : f32 to vector<256x128xf32>
    %8 = arith.maximumf %6, %7 : vector<256x128xf32>
    %9 = arith.truncf %8 : vector<256x128xf32> to vector<256x128xbf16>
    %c0_6 = arith.constant 0 : index
    %c128 = arith.constant 128 : index
    %10 = vector.load %arg3[%c0_6, %c128] : memref<128x896xbf16, #tpu.memory_space<vmem>>, vector<128x128xbf16>
    %cst_7 = arith.constant dense<0.000000e+00> : vector<256x128xf32>
    %11 = tpu.matmul %9, %10, %cst_7 {dimension_numbers = #tpu.dot_dimension_numbers<[1], [0], [0], [1], [0, 0, 1, 1], [], []>} : vector<256x128xbf16>, vector<128x128xbf16>, vector<256x128xf32> -> vector<256x128xf32>
    %c0_8 = arith.constant 0 : index
    %c128_9 = arith.constant 128 : index
    %12 = vector.load %arg4[%c0_8, %c128_9] : memref<1x896xf32, #tpu.memory_space<vmem>>, vector<1x128xf32>
    %13 = vector.broadcast %12 : vector<1x128xf32> to vector<256x128xf32>
    %14 = arith.addf %11, %13 : vector<256x128xf32>
    %15 = arith.truncf %14 : vector<256x128xf32> to vector<256x128xbf16>
    %c0_10 = arith.constant 0 : index
    %c256 = arith.constant 256 : index
    %16 = vector.load %arg3[%c0_10, %c256] : memref<128x896xbf16, #tpu.memory_space<vmem>>, vector<128x256xbf16>
    %cst_11 = arith.constant dense<0.000000e+00> : vector<256x256xf32>
    %17 = tpu.matmul %15, %16, %cst_11 {dimension_numbers = #tpu.dot_dimension_numbers<[1], [0], [0], [1], [0, 0, 1, 1], [], []>} : vector<256x128xbf16>, vector<128x256xbf16>, vector<256x256xf32> -> vector<256x256xf32>
    %c0_12 = arith.constant 0 : index
    %c256_13 = arith.constant 256 : index
    %18 = vector.load %arg4[%c0_12, %c256_13] : memref<1x896xf32, #tpu.memory_space<vmem>>, vector<1x256xf32>
    %19 = vector.broadcast %18 : vector<1x256xf32> to vector<256x256xf32>
    %20 = arith.addf %17, %19 : vector<256x256xf32>
    %21 = vector.extract_strided_slice %20 {offsets = [0, 0], sizes = [256, 128], strides = [1, 1]} : vector<256x256xf32> to vector<256x128xf32>
    %22 = vector.extract_strided_slice %20 {offsets = [0, 128], sizes = [256, 128], strides = [1, 1]} : vector<256x256xf32> to vector<256x128xf32>
    %cst_14 = arith.constant 5.000000e-01 : f32
    %23 = vector.broadcast %cst_14 : f32 to vector<256x128xf32>
    %24 = arith.mulf %23, %22 : vector<256x128xf32>
    %25 = math.exp %24 : vector<256x128xf32>
    %c0_15 = arith.constant 0 : index
    %c0_16 = arith.constant 0 : index
    %26 = vector.load %arg2[%c0_15, %c0_16] : memref<256x128xf32, #tpu.memory_space<vmem>>, vector<256x128xf32>
    %27 = arith.mulf %25, %26 : vector<256x128xf32>
    %28 = arith.addf %21, %27 : vector<256x128xf32>
    %29 = arith.truncf %28 : vector<256x128xf32> to vector<256x128xbf16>
    %c0_17 = arith.constant 0 : index
    %c512 = arith.constant 512 : index
    %30 = vector.load %arg3[%c0_17, %c512] : memref<128x896xbf16, #tpu.memory_space<vmem>>, vector<128x128xbf16>
    %cst_18 = arith.constant dense<0.000000e+00> : vector<256x128xf32>
    %31 = tpu.matmul %29, %30, %cst_18 {dimension_numbers = #tpu.dot_dimension_numbers<[1], [0], [0], [1], [0, 0, 1, 1], [], []>} : vector<256x128xbf16>, vector<128x128xbf16>, vector<256x128xf32> -> vector<256x128xf32>
    %c0_19 = arith.constant 0 : index
    %c512_20 = arith.constant 512 : index
    %32 = vector.load %arg4[%c0_19, %c512_20] : memref<1x896xf32, #tpu.memory_space<vmem>>, vector<1x128xf32>
    %33 = vector.broadcast %32 : vector<1x128xf32> to vector<256x128xf32>
    %34 = arith.addf %31, %33 : vector<256x128xf32>
    %35 = arith.truncf %34 : vector<256x128xf32> to vector<256x128xbf16>
    %c0_21 = arith.constant 0 : index
    %c640 = arith.constant 640 : index
    %36 = vector.load %arg3[%c0_21, %c640] : memref<128x896xbf16, #tpu.memory_space<vmem>>, vector<128x128xbf16>
    %cst_22 = arith.constant dense<0.000000e+00> : vector<256x128xf32>
    %37 = tpu.matmul %35, %36, %cst_22 {dimension_numbers = #tpu.dot_dimension_numbers<[1], [0], [0], [1], [0, 0, 1, 1], [], []>} : vector<256x128xbf16>, vector<128x128xbf16>, vector<256x128xf32> -> vector<256x128xf32>
    %c0_23 = arith.constant 0 : index
    %c640_24 = arith.constant 640 : index
    %38 = vector.load %arg4[%c0_23, %c640_24] : memref<1x896xf32, #tpu.memory_space<vmem>>, vector<1x128xf32>
    %39 = vector.broadcast %38 : vector<1x128xf32> to vector<256x128xf32>
    %40 = arith.addf %37, %39 : vector<256x128xf32>
    %cst_25 = arith.constant 0.000000e+00 : f32
    %41 = vector.broadcast %cst_25 : f32 to vector<256x128xf32>
    %42 = arith.maximumf %40, %41 : vector<256x128xf32>
    %43 = arith.truncf %42 : vector<256x128xf32> to vector<256x128xbf16>
    %c0_26 = arith.constant 0 : index
    %c768 = arith.constant 768 : index
    %44 = vector.load %arg3[%c0_26, %c768] : memref<128x896xbf16, #tpu.memory_space<vmem>>, vector<128x128xbf16>
    %cst_27 = arith.constant dense<0.000000e+00> : vector<256x128xf32>
    %45 = tpu.matmul %43, %44, %cst_27 {dimension_numbers = #tpu.dot_dimension_numbers<[1], [0], [0], [1], [0, 0, 1, 1], [], []>} : vector<256x128xbf16>, vector<128x128xbf16>, vector<256x128xf32> -> vector<256x128xf32>
    %c0_28 = arith.constant 0 : index
    %c768_29 = arith.constant 768 : index
    %46 = vector.load %arg4[%c0_28, %c768_29] : memref<1x896xf32, #tpu.memory_space<vmem>>, vector<1x128xf32>
    %47 = vector.broadcast %46 : vector<1x128xf32> to vector<256x128xf32>
    %48 = arith.addf %45, %47 : vector<256x128xf32>
    %c0_30 = arith.constant 0 : index
    %c0_31 = arith.constant 0 : index
    %49 = vector.load %arg5[%c0_30, %c0_31] : memref<256x640xf32, #tpu.memory_space<vmem>>, vector<256x128xf32>
    tpu.vector_store %arg5[%c0_30, %c0_31], %48 {strides = array<i32>} : memref<256x640xf32, #tpu.memory_space<vmem>>, vector<256x128xf32>,
    %c0_32 = arith.constant 0 : index
    %c128_33 = arith.constant 128 : index
    %50 = vector.load %arg5[%c0_32, %c128_33] : memref<256x640xf32, #tpu.memory_space<vmem>>, vector<256x128xf32>
    tpu.vector_store %arg5[%c0_32, %c128_33], %14 {strides = array<i32>} : memref<256x640xf32, #tpu.memory_space<vmem>>, vector<256x128xf32>,
    %c0_34 = arith.constant 0 : index
    %c256_35 = arith.constant 256 : index
    %51 = vector.load %arg5[%c0_34, %c256_35] : memref<256x640xf32, #tpu.memory_space<vmem>>, vector<256x128xf32>
    tpu.vector_store %arg5[%c0_34, %c256_35], %21 {strides = array<i32>} : memref<256x640xf32, #tpu.memory_space<vmem>>, vector<256x128xf32>,
    %c0_36 = arith.constant 0 : index
    %c384 = arith.constant 384 : index
    %52 = vector.load %arg5[%c0_36, %c384] : memref<256x640xf32, #tpu.memory_space<vmem>>, vector<256x128xf32>
    tpu.vector_store %arg5[%c0_36, %c384], %22 {strides = array<i32>} : memref<256x640xf32, #tpu.memory_space<vmem>>, vector<256x128xf32>,
    %c0_37 = arith.constant 0 : index
    %c512_38 = arith.constant 512 : index
    %53 = vector.load %arg5[%c0_37, %c512_38] : memref<256x640xf32, #tpu.memory_space<vmem>>, vector<256x128xf32>
    tpu.vector_store %arg5[%c0_37, %c512_38], %28 {strides = array<i32>} : memref<256x640xf32, #tpu.memory_space<vmem>>, vector<256x128xf32>,
    return
  }
  func.func @transform_0(%arg0: i32) -> (i32, i32) {
    %c0_i32 = arith.constant 0 : i32
    %c0_i32_0 = arith.constant 0 : i32
    return %arg0, %c0_i32 : i32, i32
  }
  func.func @transform_1(%arg0: i32) -> (i32, i32) {
    %c0_i32 = arith.constant 0 : i32
    %c0_i32_0 = arith.constant 0 : i32
    return %arg0, %c0_i32 : i32, i32
  }
  func.func @transform_2(%arg0: i32) -> (i32, i32) {
    %c0_i32 = arith.constant 0 : i32
    %c0_i32_0 = arith.constant 0 : i32
    %c0_i32_1 = arith.constant 0 : i32
    return %c0_i32, %c0_i32_0 : i32, i32
  }
  func.func @transform_3(%arg0: i32) -> (i32, i32) {
    %c0_i32 = arith.constant 0 : i32
    %c0_i32_0 = arith.constant 0 : i32
    %c0_i32_1 = arith.constant 0 : i32
    return %c0_i32, %c0_i32_0 : i32, i32
  }
  func.func @transform_4(%arg0: i32) -> (i32, i32) {
    %c0_i32 = arith.constant 0 : i32
    %c0_i32_0 = arith.constant 0 : i32
    return %arg0, %c0_i32 : i32, i32
  }
}

</mosaic_0001>

<llo_original>
// kernel: mlp_vae_forward.1
$region0: #{mlp_vae_forward.1}
  #allocation0 [shape = 'u32[]', space=smem, size = 0x4, offset = 0x4, fixed_abs, tag = 'smem constant byte address 0x4 - core index']
  #allocation1 [shape = 'u32[72,128]{1,0:T(1,128)}', space=vmem, size = 0x9000, scoped, tag = 'internal scratch']
  %s0 = inlined_call_operand.vmem [shape: f32[256,128], index: 0, kind: input, shape index: {}]
  %s1 = inlined_call_operand.vmem [shape: f32[256,128], index: 1, kind: input, shape index: {}]
  %s2 = inlined_call_operand.vmem [shape: bf16[128,896], index: 2, kind: input, shape index: {}]
  %s3 = inlined_call_operand.vmem [shape: f32[1,896], index: 3, kind: input, shape index: {}]
  %s4 = inlined_call_operand.vmem [shape: f32[256,640], index: 4, kind: output, shape index: {}]
  %s5 = sld [smem:[#allocation0]]
  $region26: #{mlp_vae_forward.1} parent=0
    _
  %s7 = ssub.s32 1, %s5
  %s8 = scalar_select 0, %s7, %s5
  // Predicated region
  $region2: #{mlp_vae_forward.1} parent=0 // pred_check
    _
  $region3: #{mlp_vae_forward.1} parent=0 // pred_check_branch
    %10 = sbr.rel (0) target = $region5
  $region4: #{mlp_vae_forward.1} parent=0 // pred_region
    _
  $region5: #{mlp_vae_forward.1} parent=0 // pred_fallthru
    _
  // Predicated region
  $region6: #{mlp_vae_forward.1} parent=0 // pred_check
    _
  $region7: #{mlp_vae_forward.1} parent=0 // pred_check_branch
    %12 = sbr.rel (0) target = $region9
  $region8: #{mlp_vae_forward.1} parent=0 // pred_region
    _
  $region9: #{mlp_vae_forward.1} parent=0 // pred_fallthru
    _
  // Predicated region
  $region10: #{mlp_vae_forward.1} parent=0 // pred_check
    _
  $region11: #{mlp_vae_forward.1} parent=0 // pred_check_branch
    %14 = sbr.rel (0) target = $region13
  $region12: #{mlp_vae_forward.1} parent=0 // pred_region
    _
  $region13: #{mlp_vae_forward.1} parent=0 // pred_fallthru
    _
  // Predicated region
  $region14: #{mlp_vae_forward.1} parent=0 // pred_check
    _
  $region15: #{mlp_vae_forward.1} parent=0 // pred_check_branch
    %16 = sbr.rel (0) target = $region17
  $region16: #{mlp_vae_forward.1} parent=0 // pred_region
    _
  $region17: #{mlp_vae_forward.1} parent=0 // pred_fallthru
    _
  %v17 = vld [vmem:[%s0] sm:$0xff]
  %v18 = vld [vmem:[%s0 + $0x8] sm:$0xff]
  %v19 = vld [vmem:[%s0 + $0x10] sm:$0xff]
  %v20 = vld [vmem:[%s0 + $0x18] sm:$0xff]
  %v21 = vld [vmem:[%s0 + $0x20] sm:$0xff]
  %v22 = vld [vmem:[%s0 + $0x28] sm:$0xff]
  %v23 = vld [vmem:[%s0 + $0x30] sm:$0xff]
  %v24 = vld [vmem:[%s0 + $0x38] sm:$0xff]
  %v25 = vld [vmem:[%s0 + $0x40] sm:$0xff]
  %v26 = vld [vmem:[%s0 + $0x48] sm:$0xff]
  %v27 = vld [vmem:[%s0 + $0x50] sm:$0xff]
  %v28 = vld [vmem:[%s0 + $0x58] sm:$0xff]
  %v29 = vld [vmem:[%s0 + $0x60] sm:$0xff]
  %v30 = vld [vmem:[%s0 + $0x68] sm:$0xff]
  %v31 = vld [vmem:[%s0 + $0x70] sm:$0xff]
  %v32 = vld [vmem:[%s0 + $0x78] sm:$0xff]
  %v33 = vld [vmem:[%s0 + $0x80] sm:$0xff]
  %v34 = vld [vmem:[%s0 + $0x88] sm:$0xff]
  %v35 = vld [vmem:[%s0 + $0x90] sm:$0xff]
  %v36 = vld [vmem:[%s0 + $0x98] sm:$0xff]
  %v37 = vld [vmem:[%s0 + $0xa0] sm:$0xff]
  %v38 = vld [vmem:[%s0 + $0xa8] sm:$0xff]
  %v39 = vld [vmem:[%s0 + $0xb0] sm:$0xff]
  %v40 = vld [vmem:[%s0 + $0xb8] sm:$0xff]
  %v41 = vld [vmem:[%s0 + $0xc0] sm:$0xff]
  %v42 = vld [vmem:[%s0 + $0xc8] sm:$0xff]
  %v43 = vld [vmem:[%s0 + $0xd0] sm:$0xff]
  %v44 = vld [vmem:[%s0 + $0xd8] sm:$0xff]
  %v45 = vld [vmem:[%s0 + $0xe0] sm:$0xff]
  %v46 = vld [vmem:[%s0 + $0xe8] sm:$0xff]
  %v47 = vld [vmem:[%s0 + $0xf0] sm:$0xff]
  %v48 = vld [vmem:[%s0 + $0xf8] sm:$0xff]
  %v49 = vpack.c.bf16 %v18, %v17
  %v50 = vpack.c.bf16 %v20, %v19
  %v51 = vpack.c.bf16 %v22, %v21
  %v52 = vpack.c.bf16 %v24, %v23
  %v53 = vpack.c.bf16 %v26, %v25
  %v54 = vpack.c.bf16 %v28, %v27
  %v55 = vpack.c.bf16 %v30, %v29
  %v56 = vpack.c.bf16 %v32, %v31
  %v57 = vpack.c.bf16 %v34, %v33
  %v58 = vpack.c.bf16 %v36, %v35
  %v59 = vpack.c.bf16 %v38, %v37
  %v60 = vpack.c.bf16 %v40, %v39
  %v61 = vpack.c.bf16 %v42, %v41
  %v62 = vpack.c.bf16 %v44, %v43
  %v63 = vpack.c.bf16 %v46, %v45
  %v64 = vpack.c.bf16 %v48, %v47
  %v65 = vld [vmem:[%s2] sm:$0xf]
  %v66 = vld [vmem:[%s2 + $0x1c] sm:$0xf]
  %v67 = vld [vmem:[%s2 + $0x38] sm:$0xf]
  %v68 = vld [vmem:[%s2 + $0x54] sm:$0xf]
  %v69 = vld [vmem:[%s2 + $0x70] sm:$0xf]
  %v70 = vld [vmem:[%s2 + $0x8c] sm:$0xf]
  %v71 = vld [vmem:[%s2 + $0xa8] sm:$0xf]
  %v72 = vld [vmem:[%s2 + $0xc4] sm:$0xf]
  %v73 = vld [vmem:[%s2 + $0xe0] sm:$0xf]
  %v74 = vld [vmem:[%s2 + $0xfc] sm:$0xf]
  %v75 = vld [vmem:[%s2 + $0x118] sm:$0xf]
  %v76 = vld [vmem:[%s2 + $0x134] sm:$0xf]
  %v77 = vld [vmem:[%s2 + $0x150] sm:$0xf]
  %v78 = vld [vmem:[%s2 + $0x16c] sm:$0xf]
  %v79 = vld [vmem:[%s2 + $0x188] sm:$0xf]
  %v80 = vld [vmem:[%s2 + $0x1a4] sm:$0xf]
  %v81 = vld [vmem:[%s3] sm:$0x1]
  %v83 = vperm.slane %v81, 0
  %v101 = vunpack.c.l.b16 %v65
  %v102 = vunpack.c.l.b16 %v66
  %v103 = vunpack.c.l.b16 %v67
  %v104 = vunpack.c.l.b16 %v68
  %v105 = vunpack.c.l.b16 %v69
  %v106 = vunpack.c.l.b16 %v70
  %v107 = vunpack.c.l.b16 %v71
  %v108 = vunpack.c.l.b16 %v72
  %v109 = vunpack.c.l.b16 %v73
  %v110 = vunpack.c.l.b16 %v74
  %v111 = vunpack.c.l.b16 %v75
  %v112 = vunpack.c.l.b16 %v76
  %v113 = vunpack.c.l.b16 %v77
  %v114 = vunpack.c.l.b16 %v78
  %v115 = vunpack.c.l.b16 %v79
  %v116 = vunpack.c.l.b16 %v80
  %v117 = vpack.c.b16 %v102, %v101
  %v118 = vpack.c.b16 %v104, %v103
  %v119 = vpack.c.b16 %v106, %v105
  %v120 = vpack.c.b16 %v108, %v107
  %v121 = vpack.c.b16 %v110, %v109
  %v122 = vpack.c.b16 %v112, %v111
  %v123 = vpack.c.b16 %v114, %v113
  %v124 = vpack.c.b16 %v116, %v115
  %133 = vmatpush.bf16.msra.mxu0 %v124
  %134 = vmatpush.bf16.msra.mxu0 %v123
  %135 = vmatpush.bf16.msra.mxu0 %v122
  %136 = vmatpush.bf16.msra.mxu0 %v121
  %137 = vmatpush.bf16.msra.mxu0 %v120
  %138 = vmatpush.bf16.msra.mxu0 %v119
  %139 = vmatpush.bf16.msra.mxu0 %v118
  %140 = vmatpush.bf16.msra.mxu0 %v117
  %141 = vmatmul.bf16.gmra.mxu0 %v49
  %v142 = vpop.f32.mrf.mxu0
  %v143 = vadd.f32 %v83, %v142
  %v144 = vpop.f32.mrf.mxu0
  %v145 = vadd.f32 %v83, %v144
  %146 = vmatmul.bf16.gmra.mxu0 %v50
  %v147 = vpop.f32.mrf.mxu0
  %v148 = vadd.f32 %v83, %v147
  %v149 = vpop.f32.mrf.mxu0
  %v150 = vadd.f32 %v83, %v149
  %151 = vmatmul.bf16.gmra.mxu0 %v51
  %v152 = vpop.f32.mrf.mxu0
  %v153 = vadd.f32 %v83, %v152
  %v154 = vpop.f32.mrf.mxu0
  %v155 = vadd.f32 %v83, %v154
  %156 = vmatmul.bf16.gmra.mxu0 %v52
  %v157 = vpop.f32.mrf.mxu0
  %v158 = vadd.f32 %v83, %v157
  %v159 = vpop.f32.mrf.mxu0
  %v160 = vadd.f32 %v83, %v159
  %161 = vmatmul.bf16.gmra.mxu0 %v53
  %v162 = vpop.f32.mrf.mxu0
  %v163 = vadd.f32 %v83, %v162
  %v164 = vpop.f32.mrf.mxu0
  %v165 = vadd.f32 %v83, %v164
  %166 = vmatmul.bf16.gmra.mxu0 %v54
  %v167 = vpop.f32.mrf.mxu0
  %v168 = vadd.f32 %v83, %v167
  %v169 = vpop.f32.mrf.mxu0
  %v170 = vadd.f32 %v83, %v169
  %171 = vmatmul.bf16.gmra.mxu0 %v55
  %v172 = vpop.f32.mrf.mxu0
  %v173 = vadd.f32 %v83, %v172
  %v174 = vpop.f32.mrf.mxu0
  %v175 = vadd.f32 %v83, %v174
  %176 = vmatmul.bf16.gmra.mxu0 %v56
  %v177 = vpop.f32.mrf.mxu0
  %v178 = vadd.f32 %v83, %v177
  %v179 = vpop.f32.mrf.mxu0
  %v180 = vadd.f32 %v83, %v179
  %181 = vmatmul.bf16.gmra.mxu0 %v57
  %v182 = vpop.f32.mrf.mxu0
  %v183 = vadd.f32 %v83, %v182
  %v184 = vpop.f32.mrf.mxu0
  %v185 = vadd.f32 %v83, %v184
  %186 = vmatmul.bf16.gmra.mxu0 %v58
  %v187 = vpop.f32.mrf.mxu0
  %v188 = vadd.f32 %v83, %v187
  %v189 = vpop.f32.mrf.mxu0
  %v190 = vadd.f32 %v83, %v189
  %191 = vmatmul.bf16.gmra.mxu0 %v59
  %v192 = vpop.f32.mrf.mxu0
  %v193 = vadd.f32 %v83, %v192
  %v194 = vpop.f32.mrf.mxu0
  %v195 = vadd.f32 %v83, %v194
  %196 = vmatmul.bf16.gmra.mxu0 %v60
  %v197 = vpop.f32.mrf.mxu0
  %v198 = vadd.f32 %v83, %v197
  %v199 = vpop.f32.mrf.mxu0
  %v200 = vadd.f32 %v83, %v199
  %201 = vmatmul.bf16.gmra.mxu0 %v61
  %v202 = vpop.f32.mrf.mxu0
  %v203 = vadd.f32 %v83, %v202
  %v204 = vpop.f32.mrf.mxu0
  %v205 = vadd.f32 %v83, %v204
  %206 = vmatmul.bf16.gmra.mxu0 %v62
  %v207 = vpop.f32.mrf.mxu0
  %v208 = vadd.f32 %v83, %v207
  %v209 = vpop.f32.mrf.mxu0
  %v210 = vadd.f32 %v83, %v209
  %211 = vmatmul.bf16.gmra.mxu0 %v63
  %v212 = vpop.f32.mrf.mxu0
  %v213 = vadd.f32 %v83, %v212
  %v214 = vpop.f32.mrf.mxu0
  %v215 = vadd.f32 %v83, %v214
  %216 = vmatmul.bf16.gmra.mxu0 %v64
  %v217 = vpop.f32.mrf.mxu0
  %v218 = vadd.f32 %v83, %v217
  %v219 = vpop.f32.mrf.mxu0
  %v220 = vadd.f32 %v83, %v219
  %221 = vdwg.mxu0
  %v222 = vmax.f32 %v143, 0.0
  %v223 = vmax.f32 %v145, 0.0
  %v224 = vmax.f32 %v148, 0.0
  %v225 = vmax.f32 %v150, 0.0
  %v226 = vmax.f32 %v153, 0.0
  %v227 = vmax.f32 %v155, 0.0
  %v228 = vmax.f32 %v158, 0.0
  %v229 = vmax.f32 %v160, 0.0
  %v230 = vmax.f32 %v163, 0.0
  %v231 = vmax.f32 %v165, 0.0
  %v232 = vmax.f32 %v168, 0.0
  %v233 = vmax.f32 %v170, 0.0
  %v234 = vmax.f32 %v173, 0.0
  %v235 = vmax.f32 %v175, 0.0
  %v236 = vmax.f32 %v178, 0.0
  %v237 = vmax.f32 %v180, 0.0
  %v238 = vmax.f32 %v183, 0.0
  %v239 = vmax.f32 %v185, 0.0
  %v240 = vmax.f32 %v188, 0.0
  %v241 = vmax.f32 %v190, 0.0
  %v242 = vmax.f32 %v193, 0.0
  %v243 = vmax.f32 %v195, 0.0
  %v244 = vmax.f32 %v198, 0.0
  %v245 = vmax.f32 %v200, 0.0
  %v246 = vmax.f32 %v203, 0.0
  %v247 = vmax.f32 %v205, 0.0
  %v248 = vmax.f32 %v208, 0.0
  %v249 = vmax.f32 %v210, 0.0
  %v250 = vmax.f32 %v213, 0.0
  %v251 = vmax.f32 %v215, 0.0
  %v252 = vmax.f32 %v218, 0.0
  %v253 = vmax.f32 %v220, 0.0
  %v254 = vpack.c.bf16 %v223, %v222
  %v255 = vpack.c.bf16 %v225, %v224
  %v256 = vpack.c.bf16 %v227, %v226
  %v257 = vpack.c.bf16 %v229, %v228
  %v258 = vpack.c.bf16 %v231, %v230
  %v259 = vpack.c.bf16 %v233, %v232
  %v260 = vpack.c.bf16 %v235, %v234
  %v261 = vpack.c.bf16 %v237, %v236
  %v262 = vpack.c.bf16 %v239, %v238
  %v263 = vpack.c.bf16 %v241, %v240
  %v264 = vpack.c.bf16 %v243, %v242
  %v265 = vpack.c.bf16 %v245, %v244
  %v266 = vpack.c.bf16 %v247, %v246
  %v267 = vpack.c.bf16 %v249, %v248
  %v268 = vpack.c.bf16 %v251, %v250
  %v269 = vpack.c.bf16 %v253, %v252
  %v270 = vld [vmem:[%s2 + $0x4] sm:$0xf]
  %v271 = vld [vmem:[%s2 + $0x20] sm:$0xf]
  %v272 = vld [vmem:[%s2 + $0x3c] sm:$0xf]
  %v273 = vld [vmem:[%s2 + $0x58] sm:$0xf]
  %v274 = vld [vmem:[%s2 + $0x74] sm:$0xf]
  %v275 = vld [vmem:[%s2 + $0x90] sm:$0xf]
  %v276 = vld [vmem:[%s2 + $0xac] sm:$0xf]
  %v277 = vld [vmem:[%s2 + $0xc8] sm:$0xf]
  %v278 = vld [vmem:[%s2 + $0xe4] sm:$0xf]
  %v279 = vld [vmem:[%s2 + $0x100] sm:$0xf]
  %v280 = vld [vmem:[%s2 + $0x11c] sm:$0xf]
  %v281 = vld [vmem:[%s2 + $0x138] sm:$0xf]
  %v282 = vld [vmem:[%s2 + $0x154] sm:$0xf]
  %v283 = vld [vmem:[%s2 + $0x170] sm:$0xf]
  %v284 = vld [vmem:[%s2 + $0x18c] sm:$0xf]
  %v285 = vld [vmem:[%s2 + $0x1a8] sm:$0xf]
  %v286 = vld [vmem:[%s3 + $0x1] sm:$0x1]
  %v288 = vperm.slane %v286, 0
  %v306 = vunpack.c.l.b16 %v270
  %v307 = vunpack.c.l.b16 %v271
  %v308 = vunpack.c.l.b16 %v272
  %v309 = vunpack.c.l.b16 %v273
  %v310 = vunpack.c.l.b16 %v274
  %v311 = vunpack.c.l.b16 %v275
  %v312 = vunpack.c.l.b16 %v276
  %v313 = vunpack.c.l.b16 %v277
  %v314 = vunpack.c.l.b16 %v278
  %v315 = vunpack.c.l.b16 %v279
  %v316 = vunpack.c.l.b16 %v280
  %v317 = vunpack.c.l.b16 %v281
  %v318 = vunpack.c.l.b16 %v282
  %v319 = vunpack.c.l.b16 %v283
  %v320 = vunpack.c.l.b16 %v284
  %v321 = vunpack.c.l.b16 %v285
  %v322 = vpack.c.b16 %v307, %v306
  %v323 = vpack.c.b16 %v309, %v308
  %v324 = vpack.c.b16 %v311, %v310
  %v325 = vpack.c.b16 %v313, %v312
  %v326 = vpack.c.b16 %v315, %v314
  %v327 = vpack.c.b16 %v317, %v316
  %v328 = vpack.c.b16 %v319, %v318
  %v329 = vpack.c.b16 %v321, %v320
  %338 = vmatpush.bf16.msra.mxu0 %v329
  %339 = vmatpush.bf16.msra.mxu0 %v328
  %340 = vmatpush.bf16.msra.mxu0 %v327
  %341 = vmatpush.bf16.msra.mxu0 %v326
  %342 = vmatpush.bf16.msra.mxu0 %v325
  %343 = vmatpush.bf16.msra.mxu0 %v324
  %344 = vmatpush.bf16.msra.mxu0 %v323
  %345 = vmatpush.bf16.msra.mxu0 %v322
  %346 = vmatmul.bf16.gmra.mxu0 %v254
  %v347 = vpop.f32.mrf.mxu0
  %v348 = vadd.f32 %v288, %v347
  %v349 = vpop.f32.mrf.mxu0
  %v350 = vadd.f32 %v288, %v349
  %351 = vmatmul.bf16.gmra.mxu0 %v255
  %v352 = vpop.f32.mrf.mxu0
  %v353 = vadd.f32 %v288, %v352
  %v354 = vpop.f32.mrf.mxu0
  %v355 = vadd.f32 %v288, %v354
  %356 = vmatmul.bf16.gmra.mxu0 %v256
  %v357 = vpop.f32.mrf.mxu0
  %v358 = vadd.f32 %v288, %v357
  %v359 = vpop.f32.mrf.mxu0
  %v360 = vadd.f32 %v288, %v359
  %361 = vmatmul.bf16.gmra.mxu0 %v257
  %v362 = vpop.f32.mrf.mxu0
  %v363 = vadd.f32 %v288, %v362
  %v364 = vpop.f32.mrf.mxu0
  %v365 = vadd.f32 %v288, %v364
  %366 = vmatmul.bf16.gmra.mxu0 %v258
  %v367 = vpop.f32.mrf.mxu0
  %v368 = vadd.f32 %v288, %v367
  %v369 = vpop.f32.mrf.mxu0
  %v370 = vadd.f32 %v288, %v369
  %371 = vmatmul.bf16.gmra.mxu0 %v259
  %v372 = vpop.f32.mrf.mxu0
  %v373 = vadd.f32 %v288, %v372
  %v374 = vpop.f32.mrf.mxu0
  %v375 = vadd.f32 %v288, %v374
  %376 = vmatmul.bf16.gmra.mxu0 %v260
  %v377 = vpop.f32.mrf.mxu0
  %v378 = vadd.f32 %v288, %v377
  %v379 = vpop.f32.mrf.mxu0
  %v380 = vadd.f32 %v288, %v379
  %381 = vmatmul.bf16.gmra.mxu0 %v261
  %v382 = vpop.f32.mrf.mxu0
  %v383 = vadd.f32 %v288, %v382
  %v384 = vpop.f32.mrf.mxu0
  %v385 = vadd.f32 %v288, %v384
  %386 = vmatmul.bf16.gmra.mxu0 %v262
  %v387 = vpop.f32.mrf.mxu0
  %v388 = vadd.f32 %v288, %v387
  %v389 = vpop.f32.mrf.mxu0
  %v390 = vadd.f32 %v288, %v389
  %391 = vmatmul.bf16.gmra.mxu0 %v263
  %v392 = vpop.f32.mrf.mxu0
  %v393 = vadd.f32 %v288, %v392
  %v394 = vpop.f32.mrf.mxu0
  %v395 = vadd.f32 %v288, %v394
  %396 = vmatmul.bf16.gmra.mxu0 %v264
  %v397 = vpop.f32.mrf.mxu0
  %v398 = vadd.f32 %v288, %v397
  %v399 = vpop.f32.mrf.mxu0
  %v400 = vadd.f32 %v288, %v399
  %401 = vmatmul.bf16.gmra.mxu0 %v265
  %v402 = vpop.f32.mrf.mxu0
  %v403 = vadd.f32 %v288, %v402
  %v404 = vpop.f32.mrf.mxu0
  %v405 = vadd.f32 %v288, %v404
  %406 = vmatmul.bf16.gmra.mxu0 %v266
  %v407 = vpop.f32.mrf.mxu0
  %v408 = vadd.f32 %v288, %v407
  %v409 = vpop.f32.mrf.mxu0
  %v410 = vadd.f32 %v288, %v409
  %411 = vmatmul.bf16.gmra.mxu0 %v267
  %v412 = vpop.f32.mrf.mxu0
  %v413 = vadd.f32 %v288, %v412
  %v414 = vpop.f32.mrf.mxu0
  %v415 = vadd.f32 %v288, %v414
  %416 = vmatmul.bf16.gmra.mxu0 %v268
  %v417 = vpop.f32.mrf.mxu0
  %v418 = vadd.f32 %v288, %v417
  %v419 = vpop.f32.mrf.mxu0
  %v420 = vadd.f32 %v288, %v419
  %421 = vmatmul.bf16.gmra.mxu0 %v269
  %v422 = vpop.f32.mrf.mxu0
  %v423 = vadd.f32 %v288, %v422
  %v424 = vpop.f32.mrf.mxu0
  %v425 = vadd.f32 %v288, %v424
  %426 = vdwg.mxu0
  %v427 = vpack.c.bf16 %v350, %v348
  %v428 = vpack.c.bf16 %v355, %v353
  %v429 = vpack.c.bf16 %v360, %v358
  %v430 = vpack.c.bf16 %v365, %v363
  %v431 = vpack.c.bf16 %v370, %v368
  %v432 = vpack.c.bf16 %v375, %v373
  %v433 = vpack.c.bf16 %v380, %v378
  %v434 = vpack.c.bf16 %v385, %v383
  %v435 = vpack.c.bf16 %v390, %v388
  %v436 = vpack.c.bf16 %v395, %v393
  %v437 = vpack.c.bf16 %v400, %v398
  %v438 = vpack.c.bf16 %v405, %v403
  %v439 = vpack.c.bf16 %v410, %v408
  %v440 = vpack.c.bf16 %v415, %v413
  %v441 = vpack.c.bf16 %v420, %v418
  %v442 = vpack.c.bf16 %v425, %v423
  %v443 = vld [vmem:[%s2 + $0x8] sm:$0xff]
  %v444 = vld [vmem:[%s2 + $0x24] sm:$0xff]
  %v445 = vld [vmem:[%s2 + $0x40] sm:$0xff]
  %v446 = vld [vmem:[%s2 + $0x5c] sm:$0xff]
  %v447 = vld [vmem:[%s2 + $0x78] sm:$0xff]
  %v448 = vld [vmem:[%s2 + $0x94] sm:$0xff]
  %v449 = vld [vmem:[%s2 + $0xb0] sm:$0xff]
  %v450 = vld [vmem:[%s2 + $0xcc] sm:$0xff]
  %v451 = vld [vmem:[%s2 + $0xe8] sm:$0xff]
  %v452 = vld [vmem:[%s2 + $0x104] sm:$0xff]
  %v453 = vld [vmem:[%s2 + $0x120] sm:$0xff]
  %v454 = vld [vmem:[%s2 + $0x13c] sm:$0xff]
  %v455 = vld [vmem:[%s2 + $0x158] sm:$0xff]
  %v456 = vld [vmem:[%s2 + $0x174] sm:$0xff]
  %v457 = vld [vmem:[%s2 + $0x190] sm:$0xff]
  %v458 = vld [vmem:[%s2 + $0x1ac] sm:$0xff]
  %v459 = vld [vmem:[%s3 + $0x2] sm:$0x3]
  %v461 = vperm.slane %v459, 0
  %v462 = vperm.slane %v459, 1
  %v481 = vunpack.c.l.b16 %v443
  %v482 = vunpack.c.h.b16 %v443
  %v483 = vunpack.c.l.b16 %v444
  %v484 = vunpack.c.h.b16 %v444
  %v485 = vunpack.c.l.b16 %v445
  %v486 = vunpack.c.h.b16 %v445
  %v487 = vunpack.c.l.b16 %v446
  %v488 = vunpack.c.h.b16 %v446
  %v489 = vunpack.c.l.b16 %v447
  %v490 = vunpack.c.h.b16 %v447
  %v491 = vunpack.c.l.b16 %v448
  %v492 = vunpack.c.h.b16 %v448
  %v493 = vunpack.c.l.b16 %v449
  %v494 = vunpack.c.h.b16 %v449
  %v495 = vunpack.c.l.b16 %v450
  %v496 = vunpack.c.h.b16 %v450
  %v497 = vunpack.c.l.b16 %v451
  %v498 = vunpack.c.h.b16 %v451
  %v499 = vunpack.c.l.b16 %v452
  %v500 = vunpack.c.h.b16 %v452
  %v501 = vunpack.c.l.b16 %v453
  %v502 = vunpack.c.h.b16 %v453
  %v503 = vunpack.c.l.b16 %v454
  %v504 = vunpack.c.h.b16 %v454
  %v505 = vunpack.c.l.b16 %v455
  %v506 = vunpack.c.h.b16 %v455
  %v507 = vunpack.c.l.b16 %v456
  %v508 = vunpack.c.h.b16 %v456
  %v509 = vunpack.c.l.b16 %v457
  %v510 = vunpack.c.h.b16 %v457
  %v511 = vunpack.c.l.b16 %v458
  %v512 = vunpack.c.h.b16 %v458
  %v513 = vpack.c.b16 %v483, %v481
  %v514 = vpack.c.b16 %v484, %v482
  %v515 = vpack.c.b16 %v487, %v485
  %v516 = vpack.c.b16 %v488, %v486
  %v517 = vpack.c.b16 %v491, %v489
  %v518 = vpack.c.b16 %v492, %v490
  %v519 = vpack.c.b16 %v495, %v493
  %v520 = vpack.c.b16 %v496, %v494
  %v521 = vpack.c.b16 %v499, %v497
  %v522 = vpack.c.b16 %v500, %v498
  %v523 = vpack.c.b16 %v503, %v501
  %v524 = vpack.c.b16 %v504, %v502
  %v525 = vpack.c.b16 %v507, %v505
  %v526 = vpack.c.b16 %v508, %v506
  %v527 = vpack.c.b16 %v511, %v509
  %v528 = vpack.c.b16 %v512, %v510
  %545 = vmatpush.bf16.msra.mxu0 %v527
  %546 = vmatpush.bf16.msra.mxu0 %v525
  %547 = vmatpush.bf16.msra.mxu0 %v523
  %548 = vmatpush.bf16.msra.mxu0 %v521
  %549 = vmatpush.bf16.msra.mxu0 %v519
  %550 = vmatpush.bf16.msra.mxu0 %v517
  %551 = vmatpush.bf16.msra.mxu0 %v515
  %552 = vmatpush.bf16.msra.mxu0 %v513
  %553 = vmatmul.bf16.gmra.mxu0 %v427
  %v554 = vpop.f32.mrf.mxu0
  %v555 = vadd.f32 %v461, %v554
  %v556 = vpop.f32.mrf.mxu0
  %v557 = vadd.f32 %v461, %v556
  %558 = vmatmul.bf16.gmra.mxu0 %v428
  %v559 = vpop.f32.mrf.mxu0
  %v560 = vadd.f32 %v461, %v559
  %v561 = vpop.f32.mrf.mxu0
  %v562 = vadd.f32 %v461, %v561
  %563 = vmatmul.bf16.gmra.mxu0 %v429
  %v564 = vpop.f32.mrf.mxu0
  %v565 = vadd.f32 %v461, %v564
  %v566 = vpop.f32.mrf.mxu0
  %v567 = vadd.f32 %v461, %v566
  %568 = vmatmul.bf16.gmra.mxu0 %v430
  %v569 = vpop.f32.mrf.mxu0
  %v570 = vadd.f32 %v461, %v569
  %v571 = vpop.f32.mrf.mxu0
  %v572 = vadd.f32 %v461, %v571
  %573 = vmatmul.bf16.gmra.mxu0 %v431
  %v574 = vpop.f32.mrf.mxu0
  %v575 = vadd.f32 %v461, %v574
  %v576 = vpop.f32.mrf.mxu0
  %v577 = vadd.f32 %v461, %v576
  %578 = vmatmul.bf16.gmra.mxu0 %v432
  %v579 = vpop.f32.mrf.mxu0
  %v580 = vadd.f32 %v461, %v579
  %v581 = vpop.f32.mrf.mxu0
  %v582 = vadd.f32 %v461, %v581
  %583 = vmatmul.bf16.gmra.mxu0 %v433
  %v584 = vpop.f32.mrf.mxu0
  %v585 = vadd.f32 %v461, %v584
  %v586 = vpop.f32.mrf.mxu0
  %v587 = vadd.f32 %v461, %v586
  %588 = vmatmul.bf16.gmra.mxu0 %v434
  %v589 = vpop.f32.mrf.mxu0
  %v590 = vadd.f32 %v461, %v589
  %v591 = vpop.f32.mrf.mxu0
  %v592 = vadd.f32 %v461, %v591
  %593 = vmatmul.bf16.gmra.mxu0 %v435
  %v594 = vpop.f32.mrf.mxu0
  %v595 = vadd.f32 %v461, %v594
  %v596 = vpop.f32.mrf.mxu0
  %v597 = vadd.f32 %v461, %v596
  %598 = vmatmul.bf16.gmra.mxu0 %v436
  %v599 = vpop.f32.mrf.mxu0
  %v600 = vadd.f32 %v461, %v599
  %v601 = vpop.f32.mrf.mxu0
  %v602 = vadd.f32 %v461, %v601
  %603 = vmatmul.bf16.gmra.mxu0 %v437
  %v604 = vpop.f32.mrf.mxu0
  %v605 = vadd.f32 %v461, %v604
  %v606 = vpop.f32.mrf.mxu0
  %v607 = vadd.f32 %v461, %v606
  %608 = vmatmul.bf16.gmra.mxu0 %v438
  %v609 = vpop.f32.mrf.mxu0
  %v610 = vadd.f32 %v461, %v609
  %v611 = vpop.f32.mrf.mxu0
  %v612 = vadd.f32 %v461, %v611
  %613 = vmatmul.bf16.gmra.mxu0 %v439
  %v614 = vpop.f32.mrf.mxu0
  %v615 = vadd.f32 %v461, %v614
  %v616 = vpop.f32.mrf.mxu0
  %v617 = vadd.f32 %v461, %v616
  %618 = vmatmul.bf16.gmra.mxu0 %v440
  %v619 = vpop.f32.mrf.mxu0
  %v620 = vadd.f32 %v461, %v619
  %v621 = vpop.f32.mrf.mxu0
  %v622 = vadd.f32 %v461, %v621
  %623 = vmatmul.bf16.gmra.mxu0 %v441
  %v624 = vpop.f32.mrf.mxu0
  %v625 = vadd.f32 %v461, %v624
  %v626 = vpop.f32.mrf.mxu0
  %v627 = vadd.f32 %v461, %v626
  %628 = vmatmul.bf16.gmra.mxu0 %v442
  %v629 = vpop.f32.mrf.mxu0
  %v630 = vadd.f32 %v461, %v629
  %v631 = vpop.f32.mrf.mxu0
  %v632 = vadd.f32 %v461, %v631
  %633 = vdwg.mxu0
  %634 = vmatpush.bf16.msra.mxu0 %v528
  %635 = vmatpush.bf16.msra.mxu0 %v526
  %636 = vmatpush.bf16.msra.mxu0 %v524
  %637 = vmatpush.bf16.msra.mxu0 %v522
  %638 = vmatpush.bf16.msra.mxu0 %v520
  %639 = vmatpush.bf16.msra.mxu0 %v518
  %640 = vmatpush.bf16.msra.mxu0 %v516
  %641 = vmatpush.bf16.msra.mxu0 %v514
  %642 = vmatmul.bf16.gmra.mxu0 %v427
  %v643 = vpop.f32.mrf.mxu0
  %v644 = vadd.f32 %v462, %v643
  %v645 = vpop.f32.mrf.mxu0
  %v646 = vadd.f32 %v462, %v645
  %647 = vmatmul.bf16.gmra.mxu0 %v428
  %v648 = vpop.f32.mrf.mxu0
  %v649 = vadd.f32 %v462, %v648
  %v650 = vpop.f32.mrf.mxu0
  %v651 = vadd.f32 %v462, %v650
  %652 = vmatmul.bf16.gmra.mxu0 %v429
  %v653 = vpop.f32.mrf.mxu0
  %v654 = vadd.f32 %v462, %v653
  %v655 = vpop.f32.mrf.mxu0
  %v656 = vadd.f32 %v462, %v655
  %657 = vmatmul.bf16.gmra.mxu0 %v430
  %v658 = vpop.f32.mrf.mxu0
  %v659 = vadd.f32 %v462, %v658
  %v660 = vpop.f32.mrf.mxu0
  %v661 = vadd.f32 %v462, %v660
  %662 = vmatmul.bf16.gmra.mxu0 %v431
  %v663 = vpop.f32.mrf.mxu0
  %v664 = vadd.f32 %v462, %v663
  %v665 = vpop.f32.mrf.mxu0
  %v666 = vadd.f32 %v462, %v665
  %667 = vmatmul.bf16.gmra.mxu0 %v432
  %v668 = vpop.f32.mrf.mxu0
  %v669 = vadd.f32 %v462, %v668
  %v670 = vpop.f32.mrf.mxu0
  %v671 = vadd.f32 %v462, %v670
  %672 = vmatmul.bf16.gmra.mxu0 %v433
  %v673 = vpop.f32.mrf.mxu0
  %v674 = vadd.f32 %v462, %v673
  %v675 = vpop.f32.mrf.mxu0
  %v676 = vadd.f32 %v462, %v675
  %677 = vmatmul.bf16.gmra.mxu0 %v434
  %v678 = vpop.f32.mrf.mxu0
  %v679 = vadd.f32 %v462, %v678
  %v680 = vpop.f32.mrf.mxu0
  %v681 = vadd.f32 %v462, %v680
  %682 = vmatmul.bf16.gmra.mxu0 %v435
  %v683 = vpop.f32.mrf.mxu0
  %v684 = vadd.f32 %v462, %v683
  %v685 = vpop.f32.mrf.mxu0
  %v686 = vadd.f32 %v462, %v685
  %687 = vmatmul.bf16.gmra.mxu0 %v436
  %v688 = vpop.f32.mrf.mxu0
  %v689 = vadd.f32 %v462, %v688
  %v690 = vpop.f32.mrf.mxu0
  %v691 = vadd.f32 %v462, %v690
  %692 = vmatmul.bf16.gmra.mxu0 %v437
  %v693 = vpop.f32.mrf.mxu0
  %v694 = vadd.f32 %v462, %v693
  %v695 = vpop.f32.mrf.mxu0
  %v696 = vadd.f32 %v462, %v695
  %697 = vmatmul.bf16.gmra.mxu0 %v438
  %v698 = vpop.f32.mrf.mxu0
  %v699 = vadd.f32 %v462, %v698
  %v700 = vpop.f32.mrf.mxu0
  %v701 = vadd.f32 %v462, %v700
  %702 = vmatmul.bf16.gmra.mxu0 %v439
  %v703 = vpop.f32.mrf.mxu0
  %v704 = vadd.f32 %v462, %v703
  %v705 = vpop.f32.mrf.mxu0
  %v706 = vadd.f32 %v462, %v705
  %707 = vmatmul.bf16.gmra.mxu0 %v440
  %v708 = vpop.f32.mrf.mxu0
  %v709 = vadd.f32 %v462, %v708
  %v710 = vpop.f32.mrf.mxu0
  %v711 = vadd.f32 %v462, %v710
  %712 = vmatmul.bf16.gmra.mxu0 %v441
  %v713 = vpop.f32.mrf.mxu0
  %v714 = vadd.f32 %v462, %v713
  %v715 = vpop.f32.mrf.mxu0
  %v716 = vadd.f32 %v462, %v715
  %717 = vmatmul.bf16.gmra.mxu0 %v442
  %v718 = vpop.f32.mrf.mxu0
  %v719 = vadd.f32 %v462, %v718
  %v720 = vpop.f32.mrf.mxu0
  %v721 = vadd.f32 %v462, %v720
  %722 = vdwg.mxu0
  %v723 = vmul.f32 %v644, 0.5
  %v724 = vmul.f32 %v646, 0.5
  %v725 = vmul.f32 %v649, 0.5
  %v726 = vmul.f32 %v651, 0.5
  %v727 = vmul.f32 %v654, 0.5
  %v728 = vmul.f32 %v656, 0.5
  %v729 = vmul.f32 %v659, 0.5
  %v730 = vmul.f32 %v661, 0.5
  %v731 = vmul.f32 %v664, 0.5
  %v732 = vmul.f32 %v666, 0.5
  %v733 = vmul.f32 %v669, 0.5
  %v734 = vmul.f32 %v671, 0.5
  %v735 = vmul.f32 %v674, 0.5
  %v736 = vmul.f32 %v676, 0.5
  %v737 = vmul.f32 %v679, 0.5
  %v738 = vmul.f32 %v681, 0.5
  %v739 = vmul.f32 %v684, 0.5
  %v740 = vmul.f32 %v686, 0.5
  %v741 = vmul.f32 %v689, 0.5
  %v742 = vmul.f32 %v691, 0.5
  %v743 = vmul.f32 %v694, 0.5
  %v744 = vmul.f32 %v696, 0.5
  %v745 = vmul.f32 %v699, 0.5
  %v746 = vmul.f32 %v701, 0.5
  %v747 = vmul.f32 %v704, 0.5
  %v748 = vmul.f32 %v706, 0.5
  %v749 = vmul.f32 %v709, 0.5
  %v750 = vmul.f32 %v711, 0.5
  %v751 = vmul.f32 %v714, 0.5
  %v752 = vmul.f32 %v716, 0.5
  %v753 = vmul.f32 %v719, 0.5
  %v754 = vmul.f32 %v721, 0.5
  %v755 = vmul.f32 %v723, 1.442695
  %v756 = vpow.pop %v755
  %v757 = vmul.f32 %v724, 1.442695
  %v758 = vpow.pop %v757
  %v759 = vmul.f32 %v725, 1.442695
  %v760 = vpow.pop %v759
  %v761 = vmul.f32 %v726, 1.442695
  %v762 = vpow.pop %v761
  %v763 = vmul.f32 %v727, 1.442695
  %v764 = vpow.pop %v763
  %v765 = vmul.f32 %v728, 1.442695
  %v766 = vpow.pop %v765
  %v767 = vmul.f32 %v729, 1.442695
  %v768 = vpow.pop %v767
  %v769 = vmul.f32 %v730, 1.442695
  %v770 = vpow.pop %v769
  %v771 = vmul.f32 %v731, 1.442695
  %v772 = vpow.pop %v771
  %v773 = vmul.f32 %v732, 1.442695
  %v774 = vpow.pop %v773
  %v775 = vmul.f32 %v733, 1.442695
  %v776 = vpow.pop %v775
  %v777 = vmul.f32 %v734, 1.442695
  %v778 = vpow.pop %v777
  %v779 = vmul.f32 %v735, 1.442695
  %v780 = vpow.pop %v779
  %v781 = vmul.f32 %v736, 1.442695
  %v782 = vpow.pop %v781
  %v783 = vmul.f32 %v737, 1.442695
  %v784 = vpow.pop %v783
  %v785 = vmul.f32 %v738, 1.442695
  %v786 = vpow.pop %v785
  %v787 = vmul.f32 %v739, 1.442695
  %v788 = vpow.pop %v787
  %v789 = vmul.f32 %v740, 1.442695
  %v790 = vpow.pop %v789
  %v791 = vmul.f32 %v741, 1.442695
  %v792 = vpow.pop %v791
  %v793 = vmul.f32 %v742, 1.442695
  %v794 = vpow.pop %v793
  %v795 = vmul.f32 %v743, 1.442695
  %v796 = vpow.pop %v795
  %v797 = vmul.f32 %v744, 1.442695
  %v798 = vpow.pop %v797
  %v799 = vmul.f32 %v745, 1.442695
  %v800 = vpow.pop %v799
  %v801 = vmul.f32 %v746, 1.442695
  %v802 = vpow.pop %v801
  %v803 = vmul.f32 %v747, 1.442695
  %v804 = vpow.pop %v803
  %v805 = vmul.f32 %v748, 1.442695
  %v806 = vpow.pop %v805
  %v807 = vmul.f32 %v749, 1.442695
  %v808 = vpow.pop %v807
  %v809 = vmul.f32 %v750, 1.442695
  %v810 = vpow.pop %v809
  %v811 = vmul.f32 %v751, 1.442695
  %v812 = vpow.pop %v811
  %v813 = vmul.f32 %v752, 1.442695
  %v814 = vpow.pop %v813
  %v815 = vmul.f32 %v753, 1.442695
  %v816 = vpow.pop %v815
  %v817 = vmul.f32 %v754, 1.442695
  %v818 = vpow.pop %v817
  %v819 = vld [vmem:[%s1] sm:$0xff]
  %v820 = vld [vmem:[%s1 + $0x8] sm:$0xff]
  %v821 = vld [vmem:[%s1 + $0x10] sm:$0xff]
  %v822 = vld [vmem:[%s1 + $0x18] sm:$0xff]
  %v823 = vld [vmem:[%s1 + $0x20] sm:$0xff]
  %v824 = vld [vmem:[%s1 + $0x28] sm:$0xff]
  %v825 = vld [vmem:[%s1 + $0x30] sm:$0xff]
  %v826 = vld [vmem:[%s1 + $0x38] sm:$0xff]
  %v827 = vld [vmem:[%s1 + $0x40] sm:$0xff]
  %v828 = vld [vmem:[%s1 + $0x48] sm:$0xff]
  %v829 = vld [vmem:[%s1 + $0x50] sm:$0xff]
  %v830 = vld [vmem:[%s1 + $0x58] sm:$0xff]
  %v831 = vld [vmem:[%s1 + $0x60] sm:$0xff]
  %v832 = vld [vmem:[%s1 + $0x68] sm:$0xff]
  %v833 = vld [vmem:[%s1 + $0x70] sm:$0xff]
  %v834 = vld [vmem:[%s1 + $0x78] sm:$0xff]
  %v835 = vld [vmem:[%s1 + $0x80] sm:$0xff]
  %v836 = vld [vmem:[%s1 + $0x88] sm:$0xff]
  %v837 = vld [vmem:[%s1 + $0x90] sm:$0xff]
  %v838 = vld [vmem:[%s1 + $0x98] sm:$0xff]
  %v839 = vld [vmem:[%s1 + $0xa0] sm:$0xff]
  %v840 = vld [vmem:[%s1 + $0xa8] sm:$0xff]
  %v841 = vld [vmem:[%s1 + $0xb0] sm:$0xff]
  %v842 = vld [vmem:[%s1 + $0xb8] sm:$0xff]
  %v843 = vld [vmem:[%s1 + $0xc0] sm:$0xff]
  %v844 = vld [vmem:[%s1 + $0xc8] sm:$0xff]
  %v845 = vld [vmem:[%s1 + $0xd0] sm:$0xff]
  %v846 = vld [vmem:[%s1 + $0xd8] sm:$0xff]
  %v847 = vld [vmem:[%s1 + $0xe0] sm:$0xff]
  %v848 = vld [vmem:[%s1 + $0xe8] sm:$0xff]
  %v849 = vld [vmem:[%s1 + $0xf0] sm:$0xff]
  %v850 = vld [vmem:[%s1 + $0xf8] sm:$0xff]
  %v851 = vmul.f32 %v756, %v819
  %v852 = vmul.f32 %v758, %v820
  %v853 = vmul.f32 %v760, %v821
  %v854 = vmul.f32 %v762, %v822
  %v855 = vmul.f32 %v764, %v823
  %v856 = vmul.f32 %v766, %v824
  %v857 = vmul.f32 %v768, %v825
  %v858 = vmul.f32 %v770, %v826
  %v859 = vmul.f32 %v772, %v827
  %v860 = vmul.f32 %v774, %v828
  %v861 = vmul.f32 %v776, %v829
  %v862 = vmul.f32 %v778, %v830
  %v863 = vmul.f32 %v780, %v831
  %v864 = vmul.f32 %v782, %v832
  %v865 = vmul.f32 %v784, %v833
  %v866 = vmul.f32 %v786, %v834
  %v867 = vmul.f32 %v788, %v835
  %v868 = vmul.f32 %v790, %v836
  %v869 = vmul.f32 %v792, %v837
  %v870 = vmul.f32 %v794, %v838
  %v871 = vmul.f32 %v796, %v839
  %v872 = vmul.f32 %v798, %v840
  %v873 = vmul.f32 %v800, %v841
  %v874 = vmul.f32 %v802, %v842
  %v875 = vmul.f32 %v804, %v843
  %v876 = vmul.f32 %v806, %v844
  %v877 = vmul.f32 %v808, %v845
  %v878 = vmul.f32 %v810, %v846
  %v879 = vmul.f32 %v812, %v847
  %v880 = vmul.f32 %v814, %v848
  %v881 = vmul.f32 %v816, %v849
  %v882 = vmul.f32 %v818, %v850
  %v883 = vadd.f32 %v555, %v851
  %v884 = vadd.f32 %v557, %v852
  %v885 = vadd.f32 %v560, %v853
  %v886 = vadd.f32 %v562, %v854
  %v887 = vadd.f32 %v565, %v855
  %v888 = vadd.f32 %v567, %v856
  %v889 = vadd.f32 %v570, %v857
  %v890 = vadd.f32 %v572, %v858
  %v891 = vadd.f32 %v575, %v859
  %v892 = vadd.f32 %v577, %v860
  %v893 = vadd.f32 %v580, %v861
  %v894 = vadd.f32 %v582, %v862
  %v895 = vadd.f32 %v585, %v863
  %v896 = vadd.f32 %v587, %v864
  %v897 = vadd.f32 %v590, %v865
  %v898 = vadd.f32 %v592, %v866
  %v899 = vadd.f32 %v595, %v867
  %v900 = vadd.f32 %v597, %v868
  %v901 = vadd.f32 %v600, %v869
  %v902 = vadd.f32 %v602, %v870
  %v903 = vadd.f32 %v605, %v871
  %v904 = vadd.f32 %v607, %v872
  %v905 = vadd.f32 %v610, %v873
  %v906 = vadd.f32 %v612, %v874
  %v907 = vadd.f32 %v615, %v875
  %v908 = vadd.f32 %v617, %v876
  %v909 = vadd.f32 %v620, %v877
  %v910 = vadd.f32 %v622, %v878
  %v911 = vadd.f32 %v625, %v879
  %v912 = vadd.f32 %v627, %v880
  %v913 = vadd.f32 %v630, %v881
  %v914 = vadd.f32 %v632, %v882
  %v915 = vpack.c.bf16 %v884, %v883
  %v916 = vpack.c.bf16 %v886, %v885
  %v917 = vpack.c.bf16 %v888, %v887
  %v918 = vpack.c.bf16 %v890, %v889
  %v919 = vpack.c.bf16 %v892, %v891
  %v920 = vpack.c.bf16 %v894, %v893
  %v921 = vpack.c.bf16 %v896, %v895
  %v922 = vpack.c.bf16 %v898, %v897
  %v923 = vpack.c.bf16 %v900, %v899
  %v924 = vpack.c.bf16 %v902, %v901
  %v925 = vpack.c.bf16 %v904, %v903
  %v926 = vpack.c.bf16 %v906, %v905
  %v927 = vpack.c.bf16 %v908, %v907
  %v928 = vpack.c.bf16 %v910, %v909
  %v929 = vpack.c.bf16 %v912, %v911
  %v930 = vpack.c.bf16 %v914, %v913
  %v931 = vld [vmem:[%s2 + $0x10] sm:$0xf]
  %v932 = vld [vmem:[%s2 + $0x2c] sm:$0xf]
  %v933 = vld [vmem:[%s2 + $0x48] sm:$0xf]
  %v934 = vld [vmem:[%s2 + $0x64] sm:$0xf]
  %v935 = vld [vmem:[%s2 + $0x80] sm:$0xf]
  %v936 = vld [vmem:[%s2 + $0x9c] sm:$0xf]
  %v937 = vld [vmem:[%s2 + $0xb8] sm:$0xf]
  %v938 = vld [vmem:[%s2 + $0xd4] sm:$0xf]
  %v939 = vld [vmem:[%s2 + $0xf0] sm:$0xf]
  %v940 = vld [vmem:[%s2 + $0x10c] sm:$0xf]
  %v941 = vld [vmem:[%s2 + $0x128] sm:$0xf]
  %v942 = vld [vmem:[%s2 + $0x144] sm:$0xf]
  %v943 = vld [vmem:[%s2 + $0x160] sm:$0xf]
  %v944 = vld [vmem:[%s2 + $0x17c] sm:$0xf]
  %v945 = vld [vmem:[%s2 + $0x198] sm:$0xf]
  %v946 = vld [vmem:[%s2 + $0x1b4] sm:$0xf]
  %v947 = vld [vmem:[%s3 + $0x4] sm:$0x1]
  %v949 = vperm.slane %v947, 0
  %v967 = vunpack.c.l.b16 %v931
  %v968 = vunpack.c.l.b16 %v932
  %v969 = vunpack.c.l.b16 %v933
  %v970 = vunpack.c.l.b16 %v934
  %v971 = vunpack.c.l.b16 %v935
  %v972 = vunpack.c.l.b16 %v936
  %v973 = vunpack.c.l.b16 %v937
  %v974 = vunpack.c.l.b16 %v938
  %v975 = vunpack.c.l.b16 %v939
  %v976 = vunpack.c.l.b16 %v940
  %v977 = vunpack.c.l.b16 %v941
  %v978 = vunpack.c.l.b16 %v942
  %v979 = vunpack.c.l.b16 %v943
  %v980 = vunpack.c.l.b16 %v944
  %v981 = vunpack.c.l.b16 %v945
  %v982 = vunpack.c.l.b16 %v946
  %v983 = vpack.c.b16 %v968, %v967
  %v984 = vpack.c.b16 %v970, %v969
  %v985 = vpack.c.b16 %v972, %v971
  %v986 = vpack.c.b16 %v974, %v973
  %v987 = vpack.c.b16 %v976, %v975
  %v988 = vpack.c.b16 %v978, %v977
  %v989 = vpack.c.b16 %v980, %v979
  %v990 = vpack.c.b16 %v982, %v981
  %999 = vmatpush.bf16.msra.mxu0 %v990
  %1000 = vmatpush.bf16.msra.mxu0 %v989
  %1001 = vmatpush.bf16.msra.mxu0 %v988
  %1002 = vmatpush.bf16.msra.mxu0 %v987
  %1003 = vmatpush.bf16.msra.mxu0 %v986
  %1004 = vmatpush.bf16.msra.mxu0 %v985
  %1005 = vmatpush.bf16.msra.mxu0 %v984
  %1006 = vmatpush.bf16.msra.mxu0 %v983
  %1007 = vmatmul.bf16.gmra.mxu0 %v915
  %v1008 = vpop.f32.mrf.mxu0
  %v1009 = vadd.f32 %v949, %v1008
  %v1010 = vpop.f32.mrf.mxu0
  %v1011 = vadd.f32 %v949, %v1010
  %1012 = vmatmul.bf16.gmra.mxu0 %v916
  %v1013 = vpop.f32.mrf.mxu0
  %v1014 = vadd.f32 %v949, %v1013
  %v1015 = vpop.f32.mrf.mxu0
  %v1016 = vadd.f32 %v949, %v1015
  %1017 = vmatmul.bf16.gmra.mxu0 %v917
  %v1018 = vpop.f32.mrf.mxu0
  %v1019 = vadd.f32 %v949, %v1018
  %v1020 = vpop.f32.mrf.mxu0
  %v1021 = vadd.f32 %v949, %v1020
  %1022 = vmatmul.bf16.gmra.mxu0 %v918
  %v1023 = vpop.f32.mrf.mxu0
  %v1024 = vadd.f32 %v949, %v1023
  %v1025 = vpop.f32.mrf.mxu0
  %v1026 = vadd.f32 %v949, %v1025
  %1027 = vmatmul.bf16.gmra.mxu0 %v919
  %v1028 = vpop.f32.mrf.mxu0
  %v1029 = vadd.f32 %v949, %v1028
  %v1030 = vpop.f32.mrf.mxu0
  %v1031 = vadd.f32 %v949, %v1030
  %1032 = vmatmul.bf16.gmra.mxu0 %v920
  %v1033 = vpop.f32.mrf.mxu0
  %v1034 = vadd.f32 %v949, %v1033
  %v1035 = vpop.f32.mrf.mxu0
  %v1036 = vadd.f32 %v949, %v1035
  %1037 = vmatmul.bf16.gmra.mxu0 %v921
  %v1038 = vpop.f32.mrf.mxu0
  %v1039 = vadd.f32 %v949, %v1038
  %v1040 = vpop.f32.mrf.mxu0
  %v1041 = vadd.f32 %v949, %v1040
  %1042 = vmatmul.bf16.gmra.mxu0 %v922
  %v1043 = vpop.f32.mrf.mxu0
  %v1044 = vadd.f32 %v949, %v1043
  %v1045 = vpop.f32.mrf.mxu0
  %v1046 = vadd.f32 %v949, %v1045
  %1047 = vmatmul.bf16.gmra.mxu0 %v923
  %v1048 = vpop.f32.mrf.mxu0
  %v1049 = vadd.f32 %v949, %v1048
  %v1050 = vpop.f32.mrf.mxu0
  %v1051 = vadd.f32 %v949, %v1050
  %1052 = vmatmul.bf16.gmra.mxu0 %v924
  %v1053 = vpop.f32.mrf.mxu0
  %v1054 = vadd.f32 %v949, %v1053
  %v1055 = vpop.f32.mrf.mxu0
  %v1056 = vadd.f32 %v949, %v1055
  %1057 = vmatmul.bf16.gmra.mxu0 %v925
  %v1058 = vpop.f32.mrf.mxu0
  %v1059 = vadd.f32 %v949, %v1058
  %v1060 = vpop.f32.mrf.mxu0
  %v1061 = vadd.f32 %v949, %v1060
  %1062 = vmatmul.bf16.gmra.mxu0 %v926
  %v1063 = vpop.f32.mrf.mxu0
  %v1064 = vadd.f32 %v949, %v1063
  %v1065 = vpop.f32.mrf.mxu0
  %v1066 = vadd.f32 %v949, %v1065
  %1067 = vmatmul.bf16.gmra.mxu0 %v927
  %v1068 = vpop.f32.mrf.mxu0
  %v1069 = vadd.f32 %v949, %v1068
  %v1070 = vpop.f32.mrf.mxu0
  %v1071 = vadd.f32 %v949, %v1070
  %1072 = vmatmul.bf16.gmra.mxu0 %v928
  %v1073 = vpop.f32.mrf.mxu0
  %v1074 = vadd.f32 %v949, %v1073
  %v1075 = vpop.f32.mrf.mxu0
  %v1076 = vadd.f32 %v949, %v1075
  %1077 = vmatmul.bf16.gmra.mxu0 %v929
  %v1078 = vpop.f32.mrf.mxu0
  %v1079 = vadd.f32 %v949, %v1078
  %v1080 = vpop.f32.mrf.mxu0
  %v1081 = vadd.f32 %v949, %v1080
  %1082 = vmatmul.bf16.gmra.mxu0 %v930
  %v1083 = vpop.f32.mrf.mxu0
  %v1084 = vadd.f32 %v949, %v1083
  %v1085 = vpop.f32.mrf.mxu0
  %v1086 = vadd.f32 %v949, %v1085
  %1087 = vdwg.mxu0
  %v1088 = vpack.c.bf16 %v1011, %v1009
  %v1089 = vpack.c.bf16 %v1016, %v1014
  %v1090 = vpack.c.bf16 %v1021, %v1019
  %v1091 = vpack.c.bf16 %v1026, %v1024
  %v1092 = vpack.c.bf16 %v1031, %v1029
  %v1093 = vpack.c.bf16 %v1036, %v1034
  %v1094 = vpack.c.bf16 %v1041, %v1039
  %v1095 = vpack.c.bf16 %v1046, %v1044
  %v1096 = vpack.c.bf16 %v1051, %v1049
  %v1097 = vpack.c.bf16 %v1056, %v1054
  %v1098 = vpack.c.bf16 %v1061, %v1059
  %v1099 = vpack.c.bf16 %v1066, %v1064
  %v1100 = vpack.c.bf16 %v1071, %v1069
  %v1101 = vpack.c.bf16 %v1076, %v1074
  %v1102 = vpack.c.bf16 %v1081, %v1079
  %v1103 = vpack.c.bf16 %v1086, %v1084
  %v1104 = vld [vmem:[%s2 + $0x14] sm:$0xf]
  %v1105 = vld [vmem:[%s2 + $0x30] sm:$0xf]
  %v1106 = vld [vmem:[%s2 + $0x4c] sm:$0xf]
  %v1107 = vld [vmem:[%s2 + $0x68] sm:$0xf]
  %v1108 = vld [vmem:[%s2 + $0x84] sm:$0xf]
  %v1109 = vld [vmem:[%s2 + $0xa0] sm:$0xf]
  %v1110 = vld [vmem:[%s2 + $0xbc] sm:$0xf]
  %v1111 = vld [vmem:[%s2 + $0xd8] sm:$0xf]
  %v1112 = vld [vmem:[%s2 + $0xf4] sm:$0xf]
  %v1113 = vld [vmem:[%s2 + $0x110] sm:$0xf]
  %v1114 = vld [vmem:[%s2 + $0x12c] sm:$0xf]
  %v1115 = vld [vmem:[%s2 + $0x148] sm:$0xf]
  %v1116 = vld [vmem:[%s2 + $0x164] sm:$0xf]
  %v1117 = vld [vmem:[%s2 + $0x180] sm:$0xf]
  %v1118 = vld [vmem:[%s2 + $0x19c] sm:$0xf]
  %v1119 = vld [vmem:[%s2 + $0x1b8] sm:$0xf]
  %v1120 = vld [vmem:[%s3 + $0x5] sm:$0x1]
  %v1122 = vperm.slane %v1120, 0
  %v1140 = vunpack.c.l.b16 %v1104
  %v1141 = vunpack.c.l.b16 %v1105
  %v1142 = vunpack.c.l.b16 %v1106
  %v1143 = vunpack.c.l.b16 %v1107
  %v1144 = vunpack.c.l.b16 %v1108
  %v1145 = vunpack.c.l.b16 %v1109
  %v1146 = vunpack.c.l.b16 %v1110
  %v1147 = vunpack.c.l.b16 %v1111
  %v1148 = vunpack.c.l.b16 %v1112
  %v1149 = vunpack.c.l.b16 %v1113
  %v1150 = vunpack.c.l.b16 %v1114
  %v1151 = vunpack.c.l.b16 %v1115
  %v1152 = vunpack.c.l.b16 %v1116
  %v1153 = vunpack.c.l.b16 %v1117
  %v1154 = vunpack.c.l.b16 %v1118
  %v1155 = vunpack.c.l.b16 %v1119
  %v1156 = vpack.c.b16 %v1141, %v1140
  %v1157 = vpack.c.b16 %v1143, %v1142
  %v1158 = vpack.c.b16 %v1145, %v1144
  %v1159 = vpack.c.b16 %v1147, %v1146
  %v1160 = vpack.c.b16 %v1149, %v1148
  %v1161 = vpack.c.b16 %v1151, %v1150
  %v1162 = vpack.c.b16 %v1153, %v1152
  %v1163 = vpack.c.b16 %v1155, %v1154
  %1172 = vmatpush.bf16.msra.mxu0 %v1163
  %1173 = vmatpush.bf16.msra.mxu0 %v1162
  %1174 = vmatpush.bf16.msra.mxu0 %v1161
  %1175 = vmatpush.bf16.msra.mxu0 %v1160
  %1176 = vmatpush.bf16.msra.mxu0 %v1159
  %1177 = vmatpush.bf16.msra.mxu0 %v1158
  %1178 = vmatpush.bf16.msra.mxu0 %v1157
  %1179 = vmatpush.bf16.msra.mxu0 %v1156
  %1180 = vmatmul.bf16.gmra.mxu0 %v1088
  %v1181 = vpop.f32.mrf.mxu0
  %v1182 = vadd.f32 %v1122, %v1181
  %v1183 = vpop.f32.mrf.mxu0
  %v1184 = vadd.f32 %v1122, %v1183
  %1185 = vmatmul.bf16.gmra.mxu0 %v1089
  %v1186 = vpop.f32.mrf.mxu0
  %v1187 = vadd.f32 %v1122, %v1186
  %v1188 = vpop.f32.mrf.mxu0
  %v1189 = vadd.f32 %v1122, %v1188
  %1190 = vmatmul.bf16.gmra.mxu0 %v1090
  %v1191 = vpop.f32.mrf.mxu0
  %v1192 = vadd.f32 %v1122, %v1191
  %v1193 = vpop.f32.mrf.mxu0
  %v1194 = vadd.f32 %v1122, %v1193
  %1195 = vmatmul.bf16.gmra.mxu0 %v1091
  %v1196 = vpop.f32.mrf.mxu0
  %v1197 = vadd.f32 %v1122, %v1196
  %v1198 = vpop.f32.mrf.mxu0
  %v1199 = vadd.f32 %v1122, %v1198
  %1200 = vmatmul.bf16.gmra.mxu0 %v1092
  %v1201 = vpop.f32.mrf.mxu0
  %v1202 = vadd.f32 %v1122, %v1201
  %v1203 = vpop.f32.mrf.mxu0
  %v1204 = vadd.f32 %v1122, %v1203
  %1205 = vmatmul.bf16.gmra.mxu0 %v1093
  %v1206 = vpop.f32.mrf.mxu0
  %v1207 = vadd.f32 %v1122, %v1206
  %v1208 = vpop.f32.mrf.mxu0
  %v1209 = vadd.f32 %v1122, %v1208
  %1210 = vmatmul.bf16.gmra.mxu0 %v1094
  %v1211 = vpop.f32.mrf.mxu0
  %v1212 = vadd.f32 %v1122, %v1211
  %v1213 = vpop.f32.mrf.mxu0
  %v1214 = vadd.f32 %v1122, %v1213
  %1215 = vmatmul.bf16.gmra.mxu0 %v1095
  %v1216 = vpop.f32.mrf.mxu0
  %v1217 = vadd.f32 %v1122, %v1216
  %v1218 = vpop.f32.mrf.mxu0
  %v1219 = vadd.f32 %v1122, %v1218
  %1220 = vmatmul.bf16.gmra.mxu0 %v1096
  %v1221 = vpop.f32.mrf.mxu0
  %v1222 = vadd.f32 %v1122, %v1221
  %v1223 = vpop.f32.mrf.mxu0
  %v1224 = vadd.f32 %v1122, %v1223
  %1225 = vmatmul.bf16.gmra.mxu0 %v1097
  %v1226 = vpop.f32.mrf.mxu0
  %v1227 = vadd.f32 %v1122, %v1226
  %v1228 = vpop.f32.mrf.mxu0
  %v1229 = vadd.f32 %v1122, %v1228
  %1230 = vmatmul.bf16.gmra.mxu0 %v1098
  %v1231 = vpop.f32.mrf.mxu0
  %v1232 = vadd.f32 %v1122, %v1231
  %v1233 = vpop.f32.mrf.mxu0
  %v1234 = vadd.f32 %v1122, %v1233
  %1235 = vmatmul.bf16.gmra.mxu0 %v1099
  %v1236 = vpop.f32.mrf.mxu0
  %v1237 = vadd.f32 %v1122, %v1236
  %v1238 = vpop.f32.mrf.mxu0
  %v1239 = vadd.f32 %v1122, %v1238
  %1240 = vmatmul.bf16.gmra.mxu0 %v1100
  %v1241 = vpop.f32.mrf.mxu0
  %v1242 = vadd.f32 %v1122, %v1241
  %v1243 = vpop.f32.mrf.mxu0
  %v1244 = vadd.f32 %v1122, %v1243
  %1245 = vmatmul.bf16.gmra.mxu0 %v1101
  %v1246 = vpop.f32.mrf.mxu0
  %v1247 = vadd.f32 %v1122, %v1246
  %v1248 = vpop.f32.mrf.mxu0
  %v1249 = vadd.f32 %v1122, %v1248
  %1250 = vmatmul.bf16.gmra.mxu0 %v1102
  %v1251 = vpop.f32.mrf.mxu0
  %v1252 = vadd.f32 %v1122, %v1251
  %v1253 = vpop.f32.mrf.mxu0
  %v1254 = vadd.f32 %v1122, %v1253
  %1255 = vmatmul.bf16.gmra.mxu0 %v1103
  %v1256 = vpop.f32.mrf.mxu0
  %v1257 = vadd.f32 %v1122, %v1256
  %v1258 = vpop.f32.mrf.mxu0
  %v1259 = vadd.f32 %v1122, %v1258
  %1260 = vdwg.mxu0
  %v1261 = vmax.f32 %v1182, 0.0
  %v1262 = vmax.f32 %v1184, 0.0
  %v1263 = vmax.f32 %v1187, 0.0
  %v1264 = vmax.f32 %v1189, 0.0
  %v1265 = vmax.f32 %v1192, 0.0
  %v1266 = vmax.f32 %v1194, 0.0
  %v1267 = vmax.f32 %v1197, 0.0
  %v1268 = vmax.f32 %v1199, 0.0
  %v1269 = vmax.f32 %v1202, 0.0
  %v1270 = vmax.f32 %v1204, 0.0
  %v1271 = vmax.f32 %v1207, 0.0
  %v1272 = vmax.f32 %v1209, 0.0
  %v1273 = vmax.f32 %v1212, 0.0
  %v1274 = vmax.f32 %v1214, 0.0
  %v1275 = vmax.f32 %v1217, 0.0
  %v1276 = vmax.f32 %v1219, 0.0
  %v1277 = vmax.f32 %v1222, 0.0
  %v1278 = vmax.f32 %v1224, 0.0
  %v1279 = vmax.f32 %v1227, 0.0
  %v1280 = vmax.f32 %v1229, 0.0
  %v1281 = vmax.f32 %v1232, 0.0
  %v1282 = vmax.f32 %v1234, 0.0
  %v1283 = vmax.f32 %v1237, 0.0
  %v1284 = vmax.f32 %v1239, 0.0
  %v1285 = vmax.f32 %v1242, 0.0
  %v1286 = vmax.f32 %v1244, 0.0
  %v1287 = vmax.f32 %v1247, 0.0
  %v1288 = vmax.f32 %v1249, 0.0
  %v1289 = vmax.f32 %v1252, 0.0
  %v1290 = vmax.f32 %v1254, 0.0
  %v1291 = vmax.f32 %v1257, 0.0
  %v1292 = vmax.f32 %v1259, 0.0
  %v1293 = vpack.c.bf16 %v1262, %v1261
  %v1294 = vpack.c.bf16 %v1264, %v1263
  %v1295 = vpack.c.bf16 %v1266, %v1265
  %v1296 = vpack.c.bf16 %v1268, %v1267
  %v1297 = vpack.c.bf16 %v1270, %v1269
  %v1298 = vpack.c.bf16 %v1272, %v1271
  %v1299 = vpack.c.bf16 %v1274, %v1273
  %v1300 = vpack.c.bf16 %v1276, %v1275
  %v1301 = vpack.c.bf16 %v1278, %v1277
  %v1302 = vpack.c.bf16 %v1280, %v1279
  %v1303 = vpack.c.bf16 %v1282, %v1281
  %v1304 = vpack.c.bf16 %v1284, %v1283
  %v1305 = vpack.c.bf16 %v1286, %v1285
  %v1306 = vpack.c.bf16 %v1288, %v1287
  %v1307 = vpack.c.bf16 %v1290, %v1289
  %v1308 = vpack.c.bf16 %v1292, %v1291
  %v1309 = vld [vmem:[%s2 + $0x18] sm:$0xf]
  %v1310 = vld [vmem:[%s2 + $0x34] sm:$0xf]
  %v1311 = vld [vmem:[%s2 + $0x50] sm:$0xf]
  %v1312 = vld [vmem:[%s2 + $0x6c] sm:$0xf]
  %v1313 = vld [vmem:[%s2 + $0x88] sm:$0xf]
  %v1314 = vld [vmem:[%s2 + $0xa4] sm:$0xf]
  %v1315 = vld [vmem:[%s2 + $0xc0] sm:$0xf]
  %v1316 = vld [vmem:[%s2 + $0xdc] sm:$0xf]
  %v1317 = vld [vmem:[%s2 + $0xf8] sm:$0xf]
  %v1318 = vld [vmem:[%s2 + $0x114] sm:$0xf]
  %v1319 = vld [vmem:[%s2 + $0x130] sm:$0xf]
  %v1320 = vld [vmem:[%s2 + $0x14c] sm:$0xf]
  %v1321 = vld [vmem:[%s2 + $0x168] sm:$0xf]
  %v1322 = vld [vmem:[%s2 + $0x184] sm:$0xf]
  %v1323 = vld [vmem:[%s2 + $0x1a0] sm:$0xf]
  %v1324 = vld [vmem:[%s2 + $0x1bc] sm:$0xf]
  %v1325 = vld [vmem:[%s3 + $0x6] sm:$0x1]
  %v1327 = vperm.slane %v1325, 0
  %v1345 = vunpack.c.l.b16 %v1309
  %v1346 = vunpack.c.l.b16 %v1310
  %v1347 = vunpack.c.l.b16 %v1311
  %v1348 = vunpack.c.l.b16 %v1312
  %v1349 = vunpack.c.l.b16 %v1313
  %v1350 = vunpack.c.l.b16 %v1314
  %v1351 = vunpack.c.l.b16 %v1315
  %v1352 = vunpack.c.l.b16 %v1316
  %v1353 = vunpack.c.l.b16 %v1317
  %v1354 = vunpack.c.l.b16 %v1318
  %v1355 = vunpack.c.l.b16 %v1319
  %v1356 = vunpack.c.l.b16 %v1320
  %v1357 = vunpack.c.l.b16 %v1321
  %v1358 = vunpack.c.l.b16 %v1322
  %v1359 = vunpack.c.l.b16 %v1323
  %v1360 = vunpack.c.l.b16 %v1324
  %v1361 = vpack.c.b16 %v1346, %v1345
  %v1362 = vpack.c.b16 %v1348, %v1347
  %v1363 = vpack.c.b16 %v1350, %v1349
  %v1364 = vpack.c.b16 %v1352, %v1351
  %v1365 = vpack.c.b16 %v1354, %v1353
  %v1366 = vpack.c.b16 %v1356, %v1355
  %v1367 = vpack.c.b16 %v1358, %v1357
  %v1368 = vpack.c.b16 %v1360, %v1359
  %1377 = vmatpush.bf16.msra.mxu0 %v1368
  %1378 = vmatpush.bf16.msra.mxu0 %v1367
  %1379 = vmatpush.bf16.msra.mxu0 %v1366
  %1380 = vmatpush.bf16.msra.mxu0 %v1365
  %1381 = vmatpush.bf16.msra.mxu0 %v1364
  %1382 = vmatpush.bf16.msra.mxu0 %v1363
  %1383 = vmatpush.bf16.msra.mxu0 %v1362
  %1384 = vmatpush.bf16.msra.mxu0 %v1361
  %1385 = vmatmul.bf16.gmra.mxu0 %v1293
  %v1386 = vpop.f32.mrf.mxu0
  %v1387 = vadd.f32 %v1327, %v1386
  %v1388 = vpop.f32.mrf.mxu0
  %v1389 = vadd.f32 %v1327, %v1388
  %1390 = vmatmul.bf16.gmra.mxu0 %v1294
  %v1391 = vpop.f32.mrf.mxu0
  %v1392 = vadd.f32 %v1327, %v1391
  %v1393 = vpop.f32.mrf.mxu0
  %v1394 = vadd.f32 %v1327, %v1393
  %1395 = vmatmul.bf16.gmra.mxu0 %v1295
  %v1396 = vpop.f32.mrf.mxu0
  %v1397 = vadd.f32 %v1327, %v1396
  %v1398 = vpop.f32.mrf.mxu0
  %v1399 = vadd.f32 %v1327, %v1398
  %1400 = vmatmul.bf16.gmra.mxu0 %v1296
  %v1401 = vpop.f32.mrf.mxu0
  %v1402 = vadd.f32 %v1327, %v1401
  %v1403 = vpop.f32.mrf.mxu0
  %v1404 = vadd.f32 %v1327, %v1403
  %1405 = vmatmul.bf16.gmra.mxu0 %v1297
  %v1406 = vpop.f32.mrf.mxu0
  %v1407 = vadd.f32 %v1327, %v1406
  %v1408 = vpop.f32.mrf.mxu0
  %v1409 = vadd.f32 %v1327, %v1408
  %1410 = vmatmul.bf16.gmra.mxu0 %v1298
  %v1411 = vpop.f32.mrf.mxu0
  %v1412 = vadd.f32 %v1327, %v1411
  %v1413 = vpop.f32.mrf.mxu0
  %v1414 = vadd.f32 %v1327, %v1413
  %1415 = vmatmul.bf16.gmra.mxu0 %v1299
  %v1416 = vpop.f32.mrf.mxu0
  %v1417 = vadd.f32 %v1327, %v1416
  %v1418 = vpop.f32.mrf.mxu0
  %v1419 = vadd.f32 %v1327, %v1418
  %1420 = vmatmul.bf16.gmra.mxu0 %v1300
  %v1421 = vpop.f32.mrf.mxu0
  %v1422 = vadd.f32 %v1327, %v1421
  %v1423 = vpop.f32.mrf.mxu0
  %v1424 = vadd.f32 %v1327, %v1423
  %1425 = vmatmul.bf16.gmra.mxu0 %v1301
  %v1426 = vpop.f32.mrf.mxu0
  %v1427 = vadd.f32 %v1327, %v1426
  %v1428 = vpop.f32.mrf.mxu0
  %v1429 = vadd.f32 %v1327, %v1428
  %1430 = vmatmul.bf16.gmra.mxu0 %v1302
  %v1431 = vpop.f32.mrf.mxu0
  %v1432 = vadd.f32 %v1327, %v1431
  %v1433 = vpop.f32.mrf.mxu0
  %v1434 = vadd.f32 %v1327, %v1433
  %1435 = vmatmul.bf16.gmra.mxu0 %v1303
  %v1436 = vpop.f32.mrf.mxu0
  %v1437 = vadd.f32 %v1327, %v1436
  %v1438 = vpop.f32.mrf.mxu0
  %v1439 = vadd.f32 %v1327, %v1438
  %1440 = vmatmul.bf16.gmra.mxu0 %v1304
  %v1441 = vpop.f32.mrf.mxu0
  %v1442 = vadd.f32 %v1327, %v1441
  %v1443 = vpop.f32.mrf.mxu0
  %v1444 = vadd.f32 %v1327, %v1443
  %1445 = vmatmul.bf16.gmra.mxu0 %v1305
  %v1446 = vpop.f32.mrf.mxu0
  %v1447 = vadd.f32 %v1327, %v1446
  %v1448 = vpop.f32.mrf.mxu0
  %v1449 = vadd.f32 %v1327, %v1448
  %1450 = vmatmul.bf16.gmra.mxu0 %v1306
  %v1451 = vpop.f32.mrf.mxu0
  %v1452 = vadd.f32 %v1327, %v1451
  %v1453 = vpop.f32.mrf.mxu0
  %v1454 = vadd.f32 %v1327, %v1453
  %1455 = vmatmul.bf16.gmra.mxu0 %v1307
  %v1456 = vpop.f32.mrf.mxu0
  %v1457 = vadd.f32 %v1327, %v1456
  %v1458 = vpop.f32.mrf.mxu0
  %v1459 = vadd.f32 %v1327, %v1458
  %1460 = vmatmul.bf16.gmra.mxu0 %v1308
  %v1461 = vpop.f32.mrf.mxu0
  %v1462 = vadd.f32 %v1327, %v1461
  %v1463 = vpop.f32.mrf.mxu0
  %v1464 = vadd.f32 %v1327, %v1463
  %1465 = vdwg.mxu0
  %1466 = vst [vmem:[%s4] sm:$0xff] %v1387
  %1467 = vst [vmem:[%s4 + $0x28] sm:$0xff] %v1389
  %1468 = vst [vmem:[%s4 + $0x50] sm:$0xff] %v1392
  %1469 = vst [vmem:[%s4 + $0x78] sm:$0xff] %v1394
  %1470 = vst [vmem:[%s4 + $0xa0] sm:$0xff] %v1397
  %1471 = vst [vmem:[%s4 + $0xc8] sm:$0xff] %v1399
  %1472 = vst [vmem:[%s4 + $0xf0] sm:$0xff] %v1402
  %1473 = vst [vmem:[%s4 + $0x118] sm:$0xff] %v1404
  %1474 = vst [vmem:[%s4 + $0x140] sm:$0xff] %v1407
  %1475 = vst [vmem:[%s4 + $0x168] sm:$0xff] %v1409
  %1476 = vst [vmem:[%s4 + $0x190] sm:$0xff] %v1412
  %1477 = vst [vmem:[%s4 + $0x1b8] sm:$0xff] %v1414
  %1478 = vst [vmem:[%s4 + $0x1e0] sm:$0xff] %v1417
  %1479 = vst [vmem:[%s4 + $0x208] sm:$0xff] %v1419
  %1480 = vst [vmem:[%s4 + $0x230] sm:$0xff] %v1422
  %1481 = vst [vmem:[%s4 + $0x258] sm:$0xff] %v1424
  %1482 = vst [vmem:[%s4 + $0x280] sm:$0xff] %v1427
  %1483 = vst [vmem:[%s4 + $0x2a8] sm:$0xff] %v1429
  %1484 = vst [vmem:[%s4 + $0x2d0] sm:$0xff] %v1432
  %1485 = vst [vmem:[%s4 + $0x2f8] sm:$0xff] %v1434
  %1486 = vst [vmem:[%s4 + $0x320] sm:$0xff] %v1437
  %1487 = vst [vmem:[%s4 + $0x348] sm:$0xff] %v1439
  %1488 = vst [vmem:[%s4 + $0x370] sm:$0xff] %v1442
  %1489 = vst [vmem:[%s4 + $0x398] sm:$0xff] %v1444
  %1490 = vst [vmem:[%s4 + $0x3c0] sm:$0xff] %v1447
  %1491 = vst [vmem:[%s4 + $0x3e8] sm:$0xff] %v1449
  %1492 = vst [vmem:[%s4 + $0x410] sm:$0xff] %v1452
  %1493 = vst [vmem:[%s4 + $0x438] sm:$0xff] %v1454
  %1494 = vst [vmem:[%s4 + $0x460] sm:$0xff] %v1457
  %1495 = vst [vmem:[%s4 + $0x488] sm:$0xff] %v1459
  %1496 = vst [vmem:[%s4 + $0x4b0] sm:$0xff] %v1462
  %1497 = vst [vmem:[%s4 + $0x4d8] sm:$0xff] %v1464
  %1498 = vst [vmem:[%s4 + $0x8] sm:$0xff] %v348
  %1499 = vst [vmem:[%s4 + $0x30] sm:$0xff] %v350
  %1500 = vst [vmem:[%s4 + $0x58] sm:$0xff] %v353
  %1501 = vst [vmem:[%s4 + $0x80] sm:$0xff] %v355
  %1502 = vst [vmem:[%s4 + $0xa8] sm:$0xff] %v358
  %1503 = vst [vmem:[%s4 + $0xd0] sm:$0xff] %v360
  %1504 = vst [vmem:[%s4 + $0xf8] sm:$0xff] %v363
  %1505 = vst [vmem:[%s4 + $0x120] sm:$0xff] %v365
  %1506 = vst [vmem:[%s4 + $0x148] sm:$0xff] %v368
  %1507 = vst [vmem:[%s4 + $0x170] sm:$0xff] %v370
  %1508 = vst [vmem:[%s4 + $0x198] sm:$0xff] %v373
  %1509 = vst [vmem:[%s4 + $0x1c0] sm:$0xff] %v375
  %1510 = vst [vmem:[%s4 + $0x1e8] sm:$0xff] %v378
  %1511 = vst [vmem:[%s4 + $0x210] sm:$0xff] %v380
  %1512 = vst [vmem:[%s4 + $0x238] sm:$0xff] %v383
  %1513 = vst [vmem:[%s4 + $0x260] sm:$0xff] %v385
  %1514 = vst [vmem:[%s4 + $0x288] sm:$0xff] %v388
  %1515 = vst [vmem:[%s4 + $0x2b0] sm:$0xff] %v390
  %1516 = vst [vmem:[%s4 + $0x2d8] sm:$0xff] %v393
  %1517 = vst [vmem:[%s4 + $0x300] sm:$0xff] %v395
  %1518 = vst [vmem:[%s4 + $0x328] sm:$0xff] %v398
  %1519 = vst [vmem:[%s4 + $0x350] sm:$0xff] %v400
  %1520 = vst [vmem:[%s4 + $0x378] sm:$0xff] %v403
  %1521 = vst [vmem:[%s4 + $0x3a0] sm:$0xff] %v405
  %1522 = vst [vmem:[%s4 + $0x3c8] sm:$0xff] %v408
  %1523 = vst [vmem:[%s4 + $0x3f0] sm:$0xff] %v410
  %1524 = vst [vmem:[%s4 + $0x418] sm:$0xff] %v413
  %1525 = vst [vmem:[%s4 + $0x440] sm:$0xff] %v415
  %1526 = vst [vmem:[%s4 + $0x468] sm:$0xff] %v418
  %1527 = vst [vmem:[%s4 + $0x490] sm:$0xff] %v420
  %1528 = vst [vmem:[%s4 + $0x4b8] sm:$0xff] %v423
  %1529 = vst [vmem:[%s4 + $0x4e0] sm:$0xff] %v425
  %1530 = vst [vmem:[%s4 + $0x10] sm:$0xff] %v555
  %1531 = vst [vmem:[%s4 + $0x38] sm:$0xff] %v557
  %1532 = vst [vmem:[%s4 + $0x60] sm:$0xff] %v560
  %1533 = vst [vmem:[%s4 + $0x88] sm:$0xff] %v562
  %1534 = vst [vmem:[%s4 + $0xb0] sm:$0xff] %v565
  %1535 = vst [vmem:[%s4 + $0xd8] sm:$0xff] %v567
  %1536 = vst [vmem:[%s4 + $0x100] sm:$0xff] %v570
  %1537 = vst [vmem:[%s4 + $0x128] sm:$0xff] %v572
  %1538 = vst [vmem:[%s4 + $0x150] sm:$0xff] %v575
  %1539 = vst [vmem:[%s4 + $0x178] sm:$0xff] %v577
  %1540 = vst [vmem:[%s4 + $0x1a0] sm:$0xff] %v580
  %1541 = vst [vmem:[%s4 + $0x1c8] sm:$0xff] %v582
  %1542 = vst [vmem:[%s4 + $0x1f0] sm:$0xff] %v585
  %1543 = vst [vmem:[%s4 + $0x218] sm:$0xff] %v587
  %1544 = vst [vmem:[%s4 + $0x240] sm:$0xff] %v590
  %1545 = vst [vmem:[%s4 + $0x268] sm:$0xff] %v592
  %1546 = vst [vmem:[%s4 + $0x290] sm:$0xff] %v595
  %1547 = vst [vmem:[%s4 + $0x2b8] sm:$0xff] %v597
  %1548 = vst [vmem:[%s4 + $0x2e0] sm:$0xff] %v600
  %1549 = vst [vmem:[%s4 + $0x308] sm:$0xff] %v602
  %1550 = vst [vmem:[%s4 + $0x330] sm:$0xff] %v605
  %1551 = vst [vmem:[%s4 + $0x358] sm:$0xff] %v607
  %1552 = vst [vmem:[%s4 + $0x380] sm:$0xff] %v610
  %1553 = vst [vmem:[%s4 + $0x3a8] sm:$0xff] %v612
  %1554 = vst [vmem:[%s4 + $0x3d0] sm:$0xff] %v615
  %1555 = vst [vmem:[%s4 + $0x3f8] sm:$0xff] %v617
  %1556 = vst [vmem:[%s4 + $0x420] sm:$0xff] %v620
  %1557 = vst [vmem:[%s4 + $0x448] sm:$0xff] %v622
  %1558 = vst [vmem:[%s4 + $0x470] sm:$0xff] %v625
  %1559 = vst [vmem:[%s4 + $0x498] sm:$0xff] %v627
  %1560 = vst [vmem:[%s4 + $0x4c0] sm:$0xff] %v630
  %1561 = vst [vmem:[%s4 + $0x4e8] sm:$0xff] %v632
  %1562 = vst [vmem:[%s4 + $0x18] sm:$0xff] %v644
  %1563 = vst [vmem:[%s4 + $0x40] sm:$0xff] %v646
  %1564 = vst [vmem:[%s4 + $0x68] sm:$0xff] %v649
  %1565 = vst [vmem:[%s4 + $0x90] sm:$0xff] %v651
  %1566 = vst [vmem:[%s4 + $0xb8] sm:$0xff] %v654
  %1567 = vst [vmem:[%s4 + $0xe0] sm:$0xff] %v656
  %1568 = vst [vmem:[%s4 + $0x108] sm:$0xff] %v659
  %1569 = vst [vmem:[%s4 + $0x130] sm:$0xff] %v661
  %1570 = vst [vmem:[%s4 + $0x158] sm:$0xff] %v664
  %1571 = vst [vmem:[%s4 + $0x180] sm:$0xff] %v666
  %1572 = vst [vmem:[%s4 + $0x1a8] sm:$0xff] %v669
  %1573 = vst [vmem:[%s4 + $0x1d0] sm:$0xff] %v671
  %1574 = vst [vmem:[%s4 + $0x1f8] sm:$0xff] %v674
  %1575 = vst [vmem:[%s4 + $0x220] sm:$0xff] %v676
  %1576 = vst [vmem:[%s4 + $0x248] sm:$0xff] %v679
  %1577 = vst [vmem:[%s4 + $0x270] sm:$0xff] %v681
  %1578 = vst [vmem:[%s4 + $0x298] sm:$0xff] %v684
  %1579 = vst [vmem:[%s4 + $0x2c0] sm:$0xff] %v686
  %1580 = vst [vmem:[%s4 + $0x2e8] sm:$0xff] %v689
  %1581 = vst [vmem:[%s4 + $0x310] sm:$0xff] %v691
  %1582 = vst [vmem:[%s4 + $0x338] sm:$0xff] %v694
  %1583 = vst [vmem:[%s4 + $0x360] sm:$0xff] %v696
  %1584 = vst [vmem:[%s4 + $0x388] sm:$0xff] %v699
  %1585 = vst [vmem:[%s4 + $0x3b0] sm:$0xff] %v701
  %1586 = vst [vmem:[%s4 + $0x3d8] sm:$0xff] %v704
  %1587 = vst [vmem:[%s4 + $0x400] sm:$0xff] %v706
  %1588 = vst [vmem:[%s4 + $0x428] sm:$0xff] %v709
  %1589 = vst [vmem:[%s4 + $0x450] sm:$0xff] %v711
  %1590 = vst [vmem:[%s4 + $0x478] sm:$0xff] %v714
  %1591 = vst [vmem:[%s4 + $0x4a0] sm:$0xff] %v716
  %1592 = vst [vmem:[%s4 + $0x4c8] sm:$0xff] %v719
  %1593 = vst [vmem:[%s4 + $0x4f0] sm:$0xff] %v721
  %1594 = vst [vmem:[%s4 + $0x20] sm:$0xff] %v883
  %1595 = vst [vmem:[%s4 + $0x48] sm:$0xff] %v884
  %1596 = vst [vmem:[%s4 + $0x70] sm:$0xff] %v885
  %1597 = vst [vmem:[%s4 + $0x98] sm:$0xff] %v886
  %1598 = vst [vmem:[%s4 + $0xc0] sm:$0xff] %v887
  %1599 = vst [vmem:[%s4 + $0xe8] sm:$0xff] %v888
  %1600 = vst [vmem:[%s4 + $0x110] sm:$0xff] %v889
  %1601 = vst [vmem:[%s4 + $0x138] sm:$0xff] %v890
  %1602 = vst [vmem:[%s4 + $0x160] sm:$0xff] %v891
  %1603 = vst [vmem:[%s4 + $0x188] sm:$0xff] %v892
  %1604 = vst [vmem:[%s4 + $0x1b0] sm:$0xff] %v893
  %1605 = vst [vmem:[%s4 + $0x1d8] sm:$0xff] %v894
  %1606 = vst [vmem:[%s4 + $0x200] sm:$0xff] %v895
  %1607 = vst [vmem:[%s4 + $0x228] sm:$0xff] %v896
  %1608 = vst [vmem:[%s4 + $0x250] sm:$0xff] %v897
  %1609 = vst [vmem:[%s4 + $0x278] sm:$0xff] %v898
  %1610 = vst [vmem:[%s4 + $0x2a0] sm:$0xff] %v899
  %1611 = vst [vmem:[%s4 + $0x2c8] sm:$0xff] %v900
  %1612 = vst [vmem:[%s4 + $0x2f0] sm:$0xff] %v901
  %1613 = vst [vmem:[%s4 + $0x318] sm:$0xff] %v902
  %1614 = vst [vmem:[%s4 + $0x340] sm:$0xff] %v903
  %1615 = vst [vmem:[%s4 + $0x368] sm:$0xff] %v904
  %1616 = vst [vmem:[%s4 + $0x390] sm:$0xff] %v905
  %1617 = vst [vmem:[%s4 + $0x3b8] sm:$0xff] %v906
  %1618 = vst [vmem:[%s4 + $0x3e0] sm:$0xff] %v907
  %1619 = vst [vmem:[%s4 + $0x408] sm:$0xff] %v908
  %1620 = vst [vmem:[%s4 + $0x430] sm:$0xff] %v909
  %1621 = vst [vmem:[%s4 + $0x458] sm:$0xff] %v910
  %1622 = vst [vmem:[%s4 + $0x480] sm:$0xff] %v911
  %1623 = vst [vmem:[%s4 + $0x4a8] sm:$0xff] %v912
  %1624 = vst [vmem:[%s4 + $0x4d0] sm:$0xff] %v913
  %1625 = vst [vmem:[%s4 + $0x4f8] sm:$0xff] %v914
  // Predicated region
  $region18: #{mlp_vae_forward.1} parent=0 // pred_check
    _
  $region19: #{mlp_vae_forward.1} parent=0 // pred_check_branch
    %1627 = sbr.rel (0) target = $region21
  $region20: #{mlp_vae_forward.1} parent=0 // pred_region
    _
  $region21: #{mlp_vae_forward.1} parent=0 // pred_fallthru
    _
  // Predicated region
  $region22: #{mlp_vae_forward.1} parent=0 // pred_check
    _
  $region23: #{mlp_vae_forward.1} parent=0 // pred_check_branch
    %1629 = sbr.rel (0) target = $region25
  $region24: #{mlp_vae_forward.1} parent=0 // pred_region
    _
  $region25: #{mlp_vae_forward.1} parent=0 // pred_fallthru
    _

</llo_original>
